<compile_context>
chip_gen: v6e
topology: v6e:2x2x1
jax: 0.10.0
libtpu: 0.0.40
codegen_flags: <defaults>
</compile_context>

<pallas_src>
import functools
import math

import numpy as np
import jax
import jax.numpy as jnp
from jax import lax
from jax.experimental import pallas as pl
from jax.experimental.pallas import tpu as pltpu


def _sigmoid(v):
    # Overflow-safe logistic (equals 1/(1+exp(-v)) without inf intermediates).
    e = jnp.exp(-jnp.abs(v))
    return jnp.where(v >= 0.0, 1.0 / (1.0 + e), e / (1.0 + e))


# ----------------------------------------------------------------------------
# Pallas kernel: one block of TB group-slabs.
#   x_ref / out_ref : (TB, 2, c1, HW)  halves split on a leading axis,
#                                      lane-dense HW last axis
#   w1_ref          : (1, k1)          conv1 taps (1->1 conv1d over channels)
#   w2_ref          : (TB*c1, ks)      depthwise conv2 taps, pre-tiled per row
#   e_ref           : (HW, H+W) bf16   fused one-hot [pool-over-W | pool-over-H]
# ----------------------------------------------------------------------------
def sfa_kernel(x_ref, w1_ref, w2_ref, e_ref, out_ref, *, H, W):
    TB, _, c1, HW = x_ref.shape
    k1 = w1_ref.shape[1]
    ks = w2_ref.shape[1]
    p1, p2 = k1 // 2, ks // 2
    R = TB * c1

    def dot_split(a, b, dims):
        # ~f32-accurate matmul of f32 `a` against the exact 0/1 bf16 one-hot
        # `b` in a single MXU call: a = hi + lo (both bf16-representable), the
        # halves stacked on the row axis, summed back after the dot.
        m = a.shape[0]
        a_hi = a.astype(jnp.bfloat16)
        a_lo = (a - a_hi.astype(jnp.float32)).astype(jnp.bfloat16)
        r = lax.dot_general(jnp.concatenate([a_hi, a_lo], axis=0), b,
                            dimension_numbers=(dims, ((), ())),
                            preferred_element_type=jnp.float32)
        return r[:m] + r[m:]

    # ------------- branch 1: channel attention on the x0 half ---------------
    x0 = x_ref[:, 0, :, :]                                    # (TB, c1, HW)
    y = jnp.mean(x0, axis=-1) * 1.15 + jnp.max(x0, axis=-1) * 0.25   # (TB, c1)

    w1 = w1_ref[...]                                          # (1, k1)
    zp = jnp.zeros((TB, p1), dtype=y.dtype)
    yp = jnp.concatenate([zp, y, zp], axis=1)                 # (TB, c1 + 2*p1)
    yc = w1[0:1, 0:1] * yp[:, 0:c1]
    for t in range(1, k1):                                    # tiny static unroll (VPU)
        yc = yc + w1[0:1, t:t + 1] * yp[:, t:t + c1]
    out_ref[:, 0, :, :] = x0 * _sigmoid(yc)[:, :, None]       # full lane-dense store

    # ------------- branch 2: spatial attention on the x1 half, batched ------
    e = e_ref[...]                                            # (HW, H+W) bf16
    x1 = x_ref[:, 1, :, :].reshape(R, HW)                     # free when c1 % 8 == 0

    pooled = dot_split(x1, e, ((1,), (0,)))                   # (R, H+W): [sum_W | sum_H]
    x_h = pooled[:, 0:H] * (1.0 / W)                          # (R, H) mean over W
    x_w = pooled[:, H:H + W] * (1.0 / H)                      # (R, W) mean over H

    w2 = w2_ref[...]                                          # (R, ks)

    def dwconv(v):
        # Depthwise k-tap "same" conv along the last axis of a pooled tensor.
        L = v.shape[-1]
        z = jnp.zeros((v.shape[0], p2), dtype=v.dtype)
        vp = jnp.concatenate([z, v, z], axis=-1)              # (R, L + 2*p2)
        acc = w2[:, 0:1] * vp[:, 0:L]
        for t in range(1, ks):
            acc = acc + w2[:, t:t + 1] * vp[:, t:t + L]
        return acc

    xh_g = _sigmoid(dwconv(x_h))                              # (R, H)
    xw_g = _sigmoid(dwconv(x_w))                              # (R, W)

    # Expand the gates back to the lane-dense (HW,) layout with transposed
    # contractions against the same one-hot (no eht/ewt copies resident).
    gh = dot_split(xh_g, e[:, 0:H], ((1,), (1,)))             # (R, HW)
    gw = dot_split(xw_g, e[:, H:H + W], ((1,), (1,)))         # (R, HW)

    out_ref[:, 1, :, :] = (x1 * gh * gw).reshape(TB, c1, HW)  # full lane-dense store


# ----------------------------------------------------------------------------
# Wrapper / glue
# ----------------------------------------------------------------------------
def conv1_kernel_size(channel1, gamma=1.4, b=1.4):
    k = int(abs((math.log(channel1, 2) + b) / gamma)) + 2
    return k if k % 2 else k + 1


def _pick_tb(BG, slab_bytes, target_bytes):
    """Largest divisor TB of BG whose block fits the target, preferring >=2
    grid steps (both v7x TensorCores busy) and an even step count."""
    divisors = [d for d in range(1, BG + 1) if BG % d == 0]
    fitting = [d for d in divisors if d * slab_bytes <= target_bytes] or [1]
    multi = [d for d in fitting if BG // d >= 2] or fitting
    even = [d for d in multi if (BG // d) % 2 == 0] or multi
    return max(even)


def sfa_forward(x, w1_taps, w2_taps, groups, *, target_block_bytes=4 << 20):
    """x: (B, C, H, W) float32.  w1_taps: (k1,).  w2_taps: (c1, ks)."""
    B, C, H, W = x.shape
    assert C % (2 * groups) == 0
    cpg = C // groups
    c1 = cpg // 2
    BG = B * groups
    HW = H * W

    # Free metadata reshape of contiguous NCHW: halves split on a leading axis
    # (sublane-aligned) and a lane-dense HW last axis.
    xg = x.reshape(BG, 2, c1, HW)

    k1 = int(w1_taps.shape[0])
    ks = int(w2_taps.shape[1])

    # Block sizing (VMEM accounting uses the sublane-padded slab footprint).
    c1_pad = -(-c1 // 8) * 8
    slab_bytes = 2 * c1_pad * HW * 4
    TB = _pick_tb(BG, slab_bytes, target_block_bytes)
    block_bytes = TB * slab_bytes

    w1v = jnp.asarray(w1_taps, jnp.float32).reshape(1, k1)
    w2v = jnp.tile(jnp.asarray(w2_taps, jnp.float32), (TB, 1))     # (TB*c1, ks)

    # Fused one-hot [pool-over-W | pool-over-H] matrix, bf16 (0/1 exact).
    rows = np.arange(HW)
    e_np = np.zeros((HW, H + W), np.float32)
    e_np[rows, rows // W] = 1.0
    e_np[rows, H + rows % W] = 1.0
    e = jnp.asarray(e_np, jnp.bfloat16)

    aux_bytes = HW * (H + W) * 2 + TB * c1 * ks * 4 + k1 * 4
    # Budget: 2 in-bufs + 2 out-bufs + ~4 block-sized compute temporaries + aux.
    vmem_limit = int(min(max(8 * block_bytes + 2 * aux_bytes + (4 << 20),
                             32 << 20), 56 << 20))

    kernel = functools.partial(sfa_kernel, H=H, W=W)
    out = pl.pallas_call(
        kernel,
        out_shape=jax.ShapeDtypeStruct((BG, 2, c1, HW), jnp.float32),
        grid_spec=pltpu.PrefetchScalarGridSpec(
            num_scalar_prefetch=0,
            grid=(BG // TB,),
            in_specs=[
                pl.BlockSpec((TB, 2, c1, HW), lambda i: (i, 0, 0, 0)),
                pl.BlockSpec((1, k1), lambda i: (0, 0)),
                pl.BlockSpec((TB * c1, ks), lambda i: (0, 0)),
                pl.BlockSpec((HW, H + W), lambda i: (0, 0)),
            ],
            out_specs=pl.BlockSpec((TB, 2, c1, HW), lambda i: (i, 0, 0, 0)),
        ),
        compiler_params=pltpu.CompilerParams(
            dimension_semantics=("parallel",),
            vmem_limit_bytes=vmem_limit,
        ),
        input_output_aliases={0: 0},   # every element of x is overwritten in-place
    )(xg, w1v, w2v, e)

    return out.reshape(B, C, H, W)


# ----------------------------------------------------------------------------
# Pure-JAX reference (mirrors the PyTorch forward exactly)
# ----------------------------------------------------------------------------
def sfa_reference(x, w1_taps, w2_taps, groups):
    B, C, H, W = x.shape
    xg = x.reshape(B * groups, -1, H, W)
    c1 = xg.shape[1] // 2
    x0, x1 = xg[:, :c1], xg[:, c1:]

    y = x0.mean(axis=(2, 3)) * 1.15 + x0.max(axis=(2, 3)) * 0.25       # (BG, c1)

    k1 = w1_taps.shape[0]
    p1 = k1 // 2
    yp = jnp.pad(y, ((0, 0), (p1, p1)))
    yc = sum(w1_taps[t] * yp[:, t:t + c1] for t in range(k1))
    xn = x0 * _sigmoid(yc)[:, :, None, None]

    x_h = x1.mean(axis=3)                                              # (BG, c1, H)
    x_w = x1.mean(axis=2)                                              # (BG, c1, W)
    ks = w2_taps.shape[1]
    p = ks // 2

    def dw(v):
        L = v.shape[-1]
        vp = jnp.pad(v, ((0, 0), (0, 0), (p, p)))
        return sum(w2_taps[None, :, t:t + 1] * vp[:, :, t:t + L] for t in range(ks))

    xh = _sigmoid(dw(x_h))
    xw = _sigmoid(dw(x_w))
    xs = x1 * xh[:, :, :, None] * xw[:, :, None, :]

    out = jnp.concatenate([xn, xs], axis=1)
    return out.reshape(B, C, H, W)


# ----------------------------------------------------------------------------
if __name__ == "__main__":
    # Small shapes consistent with the module (channels divisible by 2*groups);
    # c1 = 8 keeps the halves sublane-aligned (the kernel also supports c1 % 8 != 0).
    B, C, H, W = 2, 64, 16, 16
    groups = 4
    ks = 7                                   # conv2 kernel size (module default)
    k1 = conv1_kernel_size(C)                # conv1 kernel size from channel count
    c1 = C // (groups * 2)                   # depthwise conv2 channel count

    key = jax.random.PRNGKey(0)
    kx, kw1, kw2 = jax.random.split(key, 3)
    x = jax.random.normal(kx, (B, C, H, W), dtype=jnp.float32)
    w1_taps = jax.random.normal(kw1, (k1,), dtype=jnp.float32) * 0.3     # Conv1d(1,1,k1) taps
    w2_taps = jax.random.normal(kw2, (c1, ks), dtype=jnp.float32) * 0.3  # depthwise (c1,1,ks) taps

    out = jax.block_until_ready(sfa_forward(x, w1_taps, w2_taps, groups))
    ref = jax.block_until_ready(sfa_reference(x, w1_taps, w2_taps, groups))

    # split-f32 one-hot matmuls keep the pool/expand within ~1e-5 of exact f32;
    # everything else is exact f32.
    np.testing.assert_allclose(np.asarray(out), np.asarray(ref), rtol=2e-4, atol=2e-4)

    print("KERNEL_OK")
</pallas_src>

<mosaic_0001>
module attributes {stable_mosaic.version = 11 : i64} {
  func.func @sfa_kernel(%arg0: i32, %arg1: memref<4x2x8x256xf32, #tpu.memory_space<vmem>>, %arg2: memref<1x7xf32, #tpu.memory_space<vmem>>, %arg3: memref<32x7xf32, #tpu.memory_space<vmem>>, %arg4: memref<256x32xbf16, #tpu.memory_space<vmem>>, %arg5: memref<4x2x8x256xf32, #tpu.memory_space<vmem>>) attributes {dimension_semantics = [#tpu.dimension_semantics<parallel>], iteration_bounds = array<i64: 2>, scalar_prefetch = 0 : i64, scratch_operands = 0 : i64, tpu.core_type = #tpu.core_type<tc>, window_params = [{transform_indices = @transform_0, window_bounds = array<i64: 4, 2, 8, 256>}, {pipeline_mode = #tpu.pipeline_mode<synchronous>, transform_indices = @transform_1, window_bounds = array<i64: 1, 7>}, {pipeline_mode = #tpu.pipeline_mode<synchronous>, transform_indices = @transform_2, window_bounds = array<i64: 32, 7>}, {pipeline_mode = #tpu.pipeline_mode<synchronous>, transform_indices = @transform_3, window_bounds = array<i64: 256, 32>}, {transform_indices = @transform_4, window_bounds = array<i64: 4, 2, 8, 256>}]} {
    %c0 = arith.constant 0 : index
    %c0_0 = arith.constant 0 : index
    %c0_1 = arith.constant 0 : index
    %c0_2 = arith.constant 0 : index
    %0 = vector.load %arg1[%c0, %c0_0, %c0_1, %c0_2] : memref<4x2x8x256xf32, #tpu.memory_space<vmem>>, vector<4x1x8x256xf32>
    %1 = vector.shape_cast %0 : vector<4x1x8x256xf32> to vector<4x8x256xf32>
    %cst = arith.constant dense<0.000000e+00> : vector<4x8xf32>
    %2 = vector.multi_reduction <add>, %1, %cst [2] : vector<4x8x256xf32> to vector<4x8xf32>
    %cst_3 = arith.constant 2.560000e+02 : f32
    %3 = vector.broadcast %cst_3 : f32 to vector<4x8xf32>
    %4 = arith.divf %2, %3 : vector<4x8xf32>
    %cst_4 = arith.constant 1.150000e+00 : f32
    %5 = vector.broadcast %cst_4 : f32 to vector<4x8xf32>
    %6 = arith.mulf %4, %5 : vector<4x8xf32>
    %cst_5 = arith.constant dense<0xFF800000> : vector<4x8xf32>
    %7 = vector.multi_reduction <maximumf>, %1, %cst_5 [2] : vector<4x8x256xf32> to vector<4x8xf32>
    %cst_6 = arith.constant 2.500000e-01 : f32
    %8 = vector.broadcast %cst_6 : f32 to vector<4x8xf32>
    %9 = arith.mulf %7, %8 : vector<4x8xf32>
    %10 = arith.addf %6, %9 : vector<4x8xf32>
    %c0_7 = arith.constant 0 : index
    %c0_8 = arith.constant 0 : index
    %11 = vector.load %arg2[%c0_7, %c0_8] : memref<1x7xf32, #tpu.memory_space<vmem>>, vector<1x7xf32>
    %cst_9 = arith.constant 0.000000e+00 : f32
    %12 = vector.broadcast %cst_9 : f32 to vector<4x3xf32>
    %13 = tpu.concatenate %12, %10, %12 in 1 : vector<4x3xf32>, vector<4x8xf32>, vector<4x3xf32> -> vector<4x14xf32>
    %14 = vector.extract_strided_slice %11 {offsets = [0, 0], sizes = [1, 1], strides = [1, 1]} : vector<1x7xf32> to vector<1x1xf32>
    %15 = vector.extract_strided_slice %13 {offsets = [0, 0], sizes = [4, 8], strides = [1, 1]} : vector<4x14xf32> to vector<4x8xf32>
    %16 = vector.broadcast %14 : vector<1x1xf32> to vector<4x8xf32>
    %17 = arith.mulf %16, %15 : vector<4x8xf32>
    %18 = vector.extract_strided_slice %11 {offsets = [0, 1], sizes = [1, 1], strides = [1, 1]} : vector<1x7xf32> to vector<1x1xf32>
    %19 = vector.extract_strided_slice %13 {offsets = [0, 1], sizes = [4, 8], strides = [1, 1]} : vector<4x14xf32> to vector<4x8xf32>
    %20 = vector.broadcast %18 : vector<1x1xf32> to vector<4x8xf32>
    %21 = arith.mulf %20, %19 : vector<4x8xf32>
    %22 = arith.addf %17, %21 : vector<4x8xf32>
    %23 = vector.extract_strided_slice %11 {offsets = [0, 2], sizes = [1, 1], strides = [1, 1]} : vector<1x7xf32> to vector<1x1xf32>
    %24 = vector.extract_strided_slice %13 {offsets = [0, 2], sizes = [4, 8], strides = [1, 1]} : vector<4x14xf32> to vector<4x8xf32>
    %25 = vector.broadcast %23 : vector<1x1xf32> to vector<4x8xf32>
    %26 = arith.mulf %25, %24 : vector<4x8xf32>
    %27 = arith.addf %22, %26 : vector<4x8xf32>
    %28 = vector.extract_strided_slice %11 {offsets = [0, 3], sizes = [1, 1], strides = [1, 1]} : vector<1x7xf32> to vector<1x1xf32>
    %29 = vector.extract_strided_slice %13 {offsets = [0, 3], sizes = [4, 8], strides = [1, 1]} : vector<4x14xf32> to vector<4x8xf32>
    %30 = vector.broadcast %28 : vector<1x1xf32> to vector<4x8xf32>
    %31 = arith.mulf %30, %29 : vector<4x8xf32>
    %32 = arith.addf %27, %31 : vector<4x8xf32>
    %33 = vector.extract_strided_slice %11 {offsets = [0, 4], sizes = [1, 1], strides = [1, 1]} : vector<1x7xf32> to vector<1x1xf32>
    %34 = vector.extract_strided_slice %13 {offsets = [0, 4], sizes = [4, 8], strides = [1, 1]} : vector<4x14xf32> to vector<4x8xf32>
    %35 = vector.broadcast %33 : vector<1x1xf32> to vector<4x8xf32>
    %36 = arith.mulf %35, %34 : vector<4x8xf32>
    %37 = arith.addf %32, %36 : vector<4x8xf32>
    %38 = vector.extract_strided_slice %11 {offsets = [0, 5], sizes = [1, 1], strides = [1, 1]} : vector<1x7xf32> to vector<1x1xf32>
    %39 = vector.extract_strided_slice %13 {offsets = [0, 5], sizes = [4, 8], strides = [1, 1]} : vector<4x14xf32> to vector<4x8xf32>
    %40 = vector.broadcast %38 : vector<1x1xf32> to vector<4x8xf32>
    %41 = arith.mulf %40, %39 : vector<4x8xf32>
    %42 = arith.addf %37, %41 : vector<4x8xf32>
    %43 = vector.extract_strided_slice %11 {offsets = [0, 6], sizes = [1, 1], strides = [1, 1]} : vector<1x7xf32> to vector<1x1xf32>
    %44 = vector.extract_strided_slice %13 {offsets = [0, 6], sizes = [4, 8], strides = [1, 1]} : vector<4x14xf32> to vector<4x8xf32>
    %45 = vector.broadcast %43 : vector<1x1xf32> to vector<4x8xf32>
    %46 = arith.mulf %45, %44 : vector<4x8xf32>
    %47 = arith.addf %42, %46 : vector<4x8xf32>
    %48 = math.absf %47 : vector<4x8xf32>
    %cst_10 = arith.constant 0.000000e+00 : f32
    %49 = vector.broadcast %cst_10 : f32 to vector<4x8xf32>
    %50 = arith.subf %49, %48 : vector<4x8xf32>
    %51 = math.exp %50 : vector<4x8xf32>
    %cst_11 = arith.constant 0.000000e+00 : f32
    %52 = vector.broadcast %cst_11 : f32 to vector<4x8xf32>
    %53 = arith.cmpf oge, %47, %52 : vector<4x8xf32>
    %cst_12 = arith.constant 1.000000e+00 : f32
    %54 = vector.broadcast %cst_12 : f32 to vector<4x8xf32>
    %55 = arith.addf %54, %51 : vector<4x8xf32>
    %cst_13 = arith.constant 1.000000e+00 : f32
    %56 = vector.broadcast %cst_13 : f32 to vector<4x8xf32>
    %57 = arith.divf %56, %55 : vector<4x8xf32>
    %cst_14 = arith.constant 1.000000e+00 : f32
    %58 = vector.broadcast %cst_14 : f32 to vector<4x8xf32>
    %59 = arith.addf %58, %51 : vector<4x8xf32>
    %60 = arith.divf %51, %59 : vector<4x8xf32>
    %61 = arith.select %53, %57, %60 : vector<4x8xi1>, vector<4x8xf32>
    %62 = vector.shape_cast %61 : vector<4x8xf32> to vector<4x8x1xf32>
    %63 = vector.broadcast %62 : vector<4x8x1xf32> to vector<4x8x256xf32>
    %64 = arith.mulf %1, %63 : vector<4x8x256xf32>
    %c0_15 = arith.constant 0 : index
    %c0_16 = arith.constant 0 : index
    %c0_17 = arith.constant 0 : index
    %c0_18 = arith.constant 0 : index
    %65 = vector.load %arg5[%c0_15, %c0_16, %c0_17, %c0_18] : memref<4x2x8x256xf32, #tpu.memory_space<vmem>>, vector<4x1x8x256xf32>
    %66 = vector.shape_cast %65 : vector<4x1x8x256xf32> to vector<4x8x256xf32>
    %67 = vector.shape_cast %64 : vector<4x8x256xf32> to vector<4x1x8x256xf32>
    tpu.vector_store %arg5[%c0_15, %c0_16, %c0_17, %c0_18], %67 {strides = array<i32>} : memref<4x2x8x256xf32, #tpu.memory_space<vmem>>, vector<4x1x8x256xf32>,
    %c0_19 = arith.constant 0 : index
    %c0_20 = arith.constant 0 : index
    %68 = vector.load %arg4[%c0_19, %c0_20] : memref<256x32xbf16, #tpu.memory_space<vmem>>, vector<256x32xbf16>
    %c0_21 = arith.constant 0 : index
    %c1 = arith.constant 1 : index
    %c0_22 = arith.constant 0 : index
    %c0_23 = arith.constant 0 : index
    %69 = vector.load %arg1[%c0_21, %c1, %c0_22, %c0_23] : memref<4x2x8x256xf32, #tpu.memory_space<vmem>>, vector<4x1x8x256xf32>
    %70 = vector.shape_cast %69 : vector<4x1x8x256xf32> to vector<4x8x256xf32>
    %71 = vector.shape_cast %70 : vector<4x8x256xf32> to vector<32x256xf32>
    %72 = arith.truncf %71 : vector<32x256xf32> to vector<32x256xbf16>
    %73 = arith.extf %72 : vector<32x256xbf16> to vector<32x256xf32>
    %74 = arith.subf %71, %73 : vector<32x256xf32>
    %75 = arith.truncf %74 : vector<32x256xf32> to vector<32x256xbf16>
    %76 = tpu.concatenate %72, %75 in 0 : vector<32x256xbf16>, vector<32x256xbf16> -> vector<64x256xbf16>
    %cst_24 = arith.constant dense<0.000000e+00> : vector<64x32xf32>
    %77 = tpu.matmul %76, %68, %cst_24 {dimension_numbers = #tpu.dot_dimension_numbers<[1], [0], [0], [1], [0, 0, 1, 1], [], []>} : vector<64x256xbf16>, vector<256x32xbf16>, vector<64x32xf32> -> vector<64x32xf32>
    %78 = vector.extract_strided_slice %77 {offsets = [0, 0], sizes = [32, 32], strides = [1, 1]} : vector<64x32xf32> to vector<32x32xf32>
    %79 = vector.extract_strided_slice %77 {offsets = [32, 0], sizes = [32, 32], strides = [1, 1]} : vector<64x32xf32> to vector<32x32xf32>
    %80 = arith.addf %78, %79 : vector<32x32xf32>
    %81 = vector.extract_strided_slice %80 {offsets = [0, 0], sizes = [32, 16], strides = [1, 1]} : vector<32x32xf32> to vector<32x16xf32>
    %cst_25 = arith.constant 6.250000e-02 : f32
    %82 = vector.broadcast %cst_25 : f32 to vector<32x16xf32>
    %83 = arith.mulf %81, %82 : vector<32x16xf32>
    %84 = vector.extract_strided_slice %80 {offsets = [0, 16], sizes = [32, 16], strides = [1, 1]} : vector<32x32xf32> to vector<32x16xf32>
    %cst_26 = arith.constant 6.250000e-02 : f32
    %85 = vector.broadcast %cst_26 : f32 to vector<32x16xf32>
    %86 = arith.mulf %84, %85 : vector<32x16xf32>
    %c0_27 = arith.constant 0 : index
    %c0_28 = arith.constant 0 : index
    %87 = vector.load %arg3[%c0_27, %c0_28] : memref<32x7xf32, #tpu.memory_space<vmem>>, vector<32x7xf32>
    %cst_29 = arith.constant 0.000000e+00 : f32
    %88 = vector.broadcast %cst_29 : f32 to vector<32x3xf32>
    %89 = tpu.concatenate %88, %83, %88 in 1 : vector<32x3xf32>, vector<32x16xf32>, vector<32x3xf32> -> vector<32x22xf32>
    %90 = vector.extract_strided_slice %87 {offsets = [0, 0], sizes = [32, 1], strides = [1, 1]} : vector<32x7xf32> to vector<32x1xf32>
    %91 = vector.extract_strided_slice %89 {offsets = [0, 0], sizes = [32, 16], strides = [1, 1]} : vector<32x22xf32> to vector<32x16xf32>
    %92 = vector.broadcast %90 : vector<32x1xf32> to vector<32x16xf32>
    %93 = arith.mulf %92, %91 : vector<32x16xf32>
    %94 = vector.extract_strided_slice %87 {offsets = [0, 1], sizes = [32, 1], strides = [1, 1]} : vector<32x7xf32> to vector<32x1xf32>
    %95 = vector.extract_strided_slice %89 {offsets = [0, 1], sizes = [32, 16], strides = [1, 1]} : vector<32x22xf32> to vector<32x16xf32>
    %96 = vector.broadcast %94 : vector<32x1xf32> to vector<32x16xf32>
    %97 = arith.mulf %96, %95 : vector<32x16xf32>
    %98 = arith.addf %93, %97 : vector<32x16xf32>
    %99 = vector.extract_strided_slice %87 {offsets = [0, 2], sizes = [32, 1], strides = [1, 1]} : vector<32x7xf32> to vector<32x1xf32>
    %100 = vector.extract_strided_slice %89 {offsets = [0, 2], sizes = [32, 16], strides = [1, 1]} : vector<32x22xf32> to vector<32x16xf32>
    %101 = vector.broadcast %99 : vector<32x1xf32> to vector<32x16xf32>
    %102 = arith.mulf %101, %100 : vector<32x16xf32>
    %103 = arith.addf %98, %102 : vector<32x16xf32>
    %104 = vector.extract_strided_slice %87 {offsets = [0, 3], sizes = [32, 1], strides = [1, 1]} : vector<32x7xf32> to vector<32x1xf32>
    %105 = vector.extract_strided_slice %89 {offsets = [0, 3], sizes = [32, 16], strides = [1, 1]} : vector<32x22xf32> to vector<32x16xf32>
    %106 = vector.broadcast %104 : vector<32x1xf32> to vector<32x16xf32>
    %107 = arith.mulf %106, %105 : vector<32x16xf32>
    %108 = arith.addf %103, %107 : vector<32x16xf32>
    %109 = vector.extract_strided_slice %87 {offsets = [0, 4], sizes = [32, 1], strides = [1, 1]} : vector<32x7xf32> to vector<32x1xf32>
    %110 = vector.extract_strided_slice %89 {offsets = [0, 4], sizes = [32, 16], strides = [1, 1]} : vector<32x22xf32> to vector<32x16xf32>
    %111 = vector.broadcast %109 : vector<32x1xf32> to vector<32x16xf32>
    %112 = arith.mulf %111, %110 : vector<32x16xf32>
    %113 = arith.addf %108, %112 : vector<32x16xf32>
    %114 = vector.extract_strided_slice %87 {offsets = [0, 5], sizes = [32, 1], strides = [1, 1]} : vector<32x7xf32> to vector<32x1xf32>
    %115 = vector.extract_strided_slice %89 {offsets = [0, 5], sizes = [32, 16], strides = [1, 1]} : vector<32x22xf32> to vector<32x16xf32>
    %116 = vector.broadcast %114 : vector<32x1xf32> to vector<32x16xf32>
    %117 = arith.mulf %116, %115 : vector<32x16xf32>
    %118 = arith.addf %113, %117 : vector<32x16xf32>
    %119 = vector.extract_strided_slice %87 {offsets = [0, 6], sizes = [32, 1], strides = [1, 1]} : vector<32x7xf32> to vector<32x1xf32>
    %120 = vector.extract_strided_slice %89 {offsets = [0, 6], sizes = [32, 16], strides = [1, 1]} : vector<32x22xf32> to vector<32x16xf32>
    %121 = vector.broadcast %119 : vector<32x1xf32> to vector<32x16xf32>
    %122 = arith.mulf %121, %120 : vector<32x16xf32>
    %123 = arith.addf %118, %122 : vector<32x16xf32>
    %124 = math.absf %123 : vector<32x16xf32>
    %cst_30 = arith.constant 0.000000e+00 : f32
    %125 = vector.broadcast %cst_30 : f32 to vector<32x16xf32>
    %126 = arith.subf %125, %124 : vector<32x16xf32>
    %127 = math.exp %126 : vector<32x16xf32>
    %cst_31 = arith.constant 0.000000e+00 : f32
    %128 = vector.broadcast %cst_31 : f32 to vector<32x16xf32>
    %129 = arith.cmpf oge, %123, %128 : vector<32x16xf32>
    %cst_32 = arith.constant 1.000000e+00 : f32
    %130 = vector.broadcast %cst_32 : f32 to vector<32x16xf32>
    %131 = arith.addf %130, %127 : vector<32x16xf32>
    %cst_33 = arith.constant 1.000000e+00 : f32
    %132 = vector.broadcast %cst_33 : f32 to vector<32x16xf32>
    %133 = arith.divf %132, %131 : vector<32x16xf32>
    %cst_34 = arith.constant 1.000000e+00 : f32
    %134 = vector.broadcast %cst_34 : f32 to vector<32x16xf32>
    %135 = arith.addf %134, %127 : vector<32x16xf32>
    %136 = arith.divf %127, %135 : vector<32x16xf32>
    %137 = arith.select %129, %133, %136 : vector<32x16xi1>, vector<32x16xf32>
    %cst_35 = arith.constant 0.000000e+00 : f32
    %138 = vector.broadcast %cst_35 : f32 to vector<32x3xf32>
    %139 = tpu.concatenate %138, %86, %138 in 1 : vector<32x3xf32>, vector<32x16xf32>, vector<32x3xf32> -> vector<32x22xf32>
    %140 = vector.extract_strided_slice %87 {offsets = [0, 0], sizes = [32, 1], strides = [1, 1]} : vector<32x7xf32> to vector<32x1xf32>
    %141 = vector.extract_strided_slice %139 {offsets = [0, 0], sizes = [32, 16], strides = [1, 1]} : vector<32x22xf32> to vector<32x16xf32>
    %142 = vector.broadcast %140 : vector<32x1xf32> to vector<32x16xf32>
    %143 = arith.mulf %142, %141 : vector<32x16xf32>
    %144 = vector.extract_strided_slice %87 {offsets = [0, 1], sizes = [32, 1], strides = [1, 1]} : vector<32x7xf32> to vector<32x1xf32>
    %145 = vector.extract_strided_slice %139 {offsets = [0, 1], sizes = [32, 16], strides = [1, 1]} : vector<32x22xf32> to vector<32x16xf32>
    %146 = vector.broadcast %144 : vector<32x1xf32> to vector<32x16xf32>
    %147 = arith.mulf %146, %145 : vector<32x16xf32>
    %148 = arith.addf %143, %147 : vector<32x16xf32>
    %149 = vector.extract_strided_slice %87 {offsets = [0, 2], sizes = [32, 1], strides = [1, 1]} : vector<32x7xf32> to vector<32x1xf32>
    %150 = vector.extract_strided_slice %139 {offsets = [0, 2], sizes = [32, 16], strides = [1, 1]} : vector<32x22xf32> to vector<32x16xf32>
    %151 = vector.broadcast %149 : vector<32x1xf32> to vector<32x16xf32>
    %152 = arith.mulf %151, %150 : vector<32x16xf32>
    %153 = arith.addf %148, %152 : vector<32x16xf32>
    %154 = vector.extract_strided_slice %87 {offsets = [0, 3], sizes = [32, 1], strides = [1, 1]} : vector<32x7xf32> to vector<32x1xf32>
    %155 = vector.extract_strided_slice %139 {offsets = [0, 3], sizes = [32, 16], strides = [1, 1]} : vector<32x22xf32> to vector<32x16xf32>
    %156 = vector.broadcast %154 : vector<32x1xf32> to vector<32x16xf32>
    %157 = arith.mulf %156, %155 : vector<32x16xf32>
    %158 = arith.addf %153, %157 : vector<32x16xf32>
    %159 = vector.extract_strided_slice %87 {offsets = [0, 4], sizes = [32, 1], strides = [1, 1]} : vector<32x7xf32> to vector<32x1xf32>
    %160 = vector.extract_strided_slice %139 {offsets = [0, 4], sizes = [32, 16], strides = [1, 1]} : vector<32x22xf32> to vector<32x16xf32>
    %161 = vector.broadcast %159 : vector<32x1xf32> to vector<32x16xf32>
    %162 = arith.mulf %161, %160 : vector<32x16xf32>
    %163 = arith.addf %158, %162 : vector<32x16xf32>
    %164 = vector.extract_strided_slice %87 {offsets = [0, 5], sizes = [32, 1], strides = [1, 1]} : vector<32x7xf32> to vector<32x1xf32>
    %165 = vector.extract_strided_slice %139 {offsets = [0, 5], sizes = [32, 16], strides = [1, 1]} : vector<32x22xf32> to vector<32x16xf32>
    %166 = vector.broadcast %164 : vector<32x1xf32> to vector<32x16xf32>
    %167 = arith.mulf %166, %165 : vector<32x16xf32>
    %168 = arith.addf %163, %167 : vector<32x16xf32>
    %169 = vector.extract_strided_slice %87 {offsets = [0, 6], sizes = [32, 1], strides = [1, 1]} : vector<32x7xf32> to vector<32x1xf32>
    %170 = vector.extract_strided_slice %139 {offsets = [0, 6], sizes = [32, 16], strides = [1, 1]} : vector<32x22xf32> to vector<32x16xf32>
    %171 = vector.broadcast %169 : vector<32x1xf32> to vector<32x16xf32>
    %172 = arith.mulf %171, %170 : vector<32x16xf32>
    %173 = arith.addf %168, %172 : vector<32x16xf32>
    %174 = math.absf %173 : vector<32x16xf32>
    %cst_36 = arith.constant 0.000000e+00 : f32
    %175 = vector.broadcast %cst_36 : f32 to vector<32x16xf32>
    %176 = arith.subf %175, %174 : vector<32x16xf32>
    %177 = math.exp %176 : vector<32x16xf32>
    %cst_37 = arith.constant 0.000000e+00 : f32
    %178 = vector.broadcast %cst_37 : f32 to vector<32x16xf32>
    %179 = arith.cmpf oge, %173, %178 : vector<32x16xf32>
    %cst_38 = arith.constant 1.000000e+00 : f32
    %180 = vector.broadcast %cst_38 : f32 to vector<32x16xf32>
    %181 = arith.addf %180, %177 : vector<32x16xf32>
    %cst_39 = arith.constant 1.000000e+00 : f32
    %182 = vector.broadcast %cst_39 : f32 to vector<32x16xf32>
    %183 = arith.divf %182, %181 : vector<32x16xf32>
    %cst_40 = arith.constant 1.000000e+00 : f32
    %184 = vector.broadcast %cst_40 : f32 to vector<32x16xf32>
    %185 = arith.addf %184, %177 : vector<32x16xf32>
    %186 = arith.divf %177, %185 : vector<32x16xf32>
    %187 = arith.select %179, %183, %186 : vector<32x16xi1>, vector<32x16xf32>
    %188 = vector.extract_strided_slice %68 {offsets = [0, 0], sizes = [256, 16], strides = [1, 1]} : vector<256x32xbf16> to vector<256x16xbf16>
    %189 = arith.truncf %137 : vector<32x16xf32> to vector<32x16xbf16>
    %190 = arith.extf %189 : vector<32x16xbf16> to vector<32x16xf32>
    %191 = arith.subf %137, %190 : vector<32x16xf32>
    %192 = arith.truncf %191 : vector<32x16xf32> to vector<32x16xbf16>
    %193 = tpu.concatenate %189, %192 in 0 : vector<32x16xbf16>, vector<32x16xbf16> -> vector<64x16xbf16>
    %cst_41 = arith.constant dense<0.000000e+00> : vector<64x256xf32>
    %194 = tpu.matmul %193, %188, %cst_41 {dimension_numbers = #tpu.dot_dimension_numbers<[1], [1], [0], [0], [0, 0, 1, 0], [], []>} : vector<64x16xbf16>, vector<256x16xbf16>, vector<64x256xf32> -> vector<64x256xf32>
    %195 = vector.extract_strided_slice %194 {offsets = [0, 0], sizes = [32, 256], strides = [1, 1]} : vector<64x256xf32> to vector<32x256xf32>
    %196 = vector.extract_strided_slice %194 {offsets = [32, 0], sizes = [32, 256], strides = [1, 1]} : vector<64x256xf32> to vector<32x256xf32>
    %197 = arith.addf %195, %196 : vector<32x256xf32>
    %198 = vector.extract_strided_slice %68 {offsets = [0, 16], sizes = [256, 16], strides = [1, 1]} : vector<256x32xbf16> to vector<256x16xbf16>
    %199 = arith.truncf %187 : vector<32x16xf32> to vector<32x16xbf16>
    %200 = arith.extf %199 : vector<32x16xbf16> to vector<32x16xf32>
    %201 = arith.subf %187, %200 : vector<32x16xf32>
    %202 = arith.truncf %201 : vector<32x16xf32> to vector<32x16xbf16>
    %203 = tpu.concatenate %199, %202 in 0 : vector<32x16xbf16>, vector<32x16xbf16> -> vector<64x16xbf16>
    %cst_42 = arith.constant dense<0.000000e+00> : vector<64x256xf32>
    %204 = tpu.matmul %203, %198, %cst_42 {dimension_numbers = #tpu.dot_dimension_numbers<[1], [1], [0], [0], [0, 0, 1, 0], [], []>} : vector<64x16xbf16>, vector<256x16xbf16>, vector<64x256xf32> -> vector<64x256xf32>
    %205 = vector.extract_strided_slice %204 {offsets = [0, 0], sizes = [32, 256], strides = [1, 1]} : vector<64x256xf32> to vector<32x256xf32>
    %206 = vector.extract_strided_slice %204 {offsets = [32, 0], sizes = [32, 256], strides = [1, 1]} : vector<64x256xf32> to vector<32x256xf32>
    %207 = arith.addf %205, %206 : vector<32x256xf32>
    %208 = arith.mulf %71, %197 : vector<32x256xf32>
    %209 = arith.mulf %208, %207 : vector<32x256xf32>
    %210 = vector.shape_cast %209 : vector<32x256xf32> to vector<4x8x256xf32>
    %c0_43 = arith.constant 0 : index
    %c1_44 = arith.constant 1 : index
    %c0_45 = arith.constant 0 : index
    %c0_46 = arith.constant 0 : index
    %211 = vector.load %arg5[%c0_43, %c1_44, %c0_45, %c0_46] : memref<4x2x8x256xf32, #tpu.memory_space<vmem>>, vector<4x1x8x256xf32>
    %212 = vector.shape_cast %211 : vector<4x1x8x256xf32> to vector<4x8x256xf32>
    %213 = vector.shape_cast %210 : vector<4x8x256xf32> to vector<4x1x8x256xf32>
    tpu.vector_store %arg5[%c0_43, %c1_44, %c0_45, %c0_46], %213 {strides = array<i32>} : memref<4x2x8x256xf32, #tpu.memory_space<vmem>>, vector<4x1x8x256xf32>,
    return
  }
  func.func @transform_0(%arg0: i32) -> (i32, i32, i32, i32) {
    %c0_i32 = arith.constant 0 : i32
    %c0_i32_0 = arith.constant 0 : i32
    %c0_i32_1 = arith.constant 0 : i32
    %c0_i32_2 = arith.constant 0 : i32
    return %arg0, %c0_i32, %c0_i32_0, %c0_i32_1 : i32, i32, i32, i32
  }
  func.func @transform_1(%arg0: i32) -> (i32, i32) {
    %c0_i32 = arith.constant 0 : i32
    %c0_i32_0 = arith.constant 0 : i32
    %c0_i32_1 = arith.constant 0 : i32
    return %c0_i32, %c0_i32_0 : i32, i32
  }
  func.func @transform_2(%arg0: i32) -> (i32, i32) {
    %c0_i32 = arith.constant 0 : i32
    %c0_i32_0 = arith.constant 0 : i32
    %c0_i32_1 = arith.constant 0 : i32
    return %c0_i32, %c0_i32_0 : i32, i32
  }
  func.func @transform_3(%arg0: i32) -> (i32, i32) {
    %c0_i32 = arith.constant 0 : i32
    %c0_i32_0 = arith.constant 0 : i32
    %c0_i32_1 = arith.constant 0 : i32
    return %c0_i32, %c0_i32_0 : i32, i32
  }
  func.func @transform_4(%arg0: i32) -> (i32, i32, i32, i32) {
    %c0_i32 = arith.constant 0 : i32
    %c0_i32_0 = arith.constant 0 : i32
    %c0_i32_1 = arith.constant 0 : i32
    %c0_i32_2 = arith.constant 0 : i32
    return %arg0, %c0_i32, %c0_i32_0, %c0_i32_1 : i32, i32, i32, i32
  }
}

</mosaic_0001>

<llo_original>
// kernel: tpu_custom_call.1
$region0: #{tpu_custom_call.1}
  #allocation0 [shape = 'u32[]', space=smem, size = 0x4, offset = 0x4, fixed_abs, tag = 'smem constant byte address 0x4 - core index']
  #allocation1 [shape = 'u32[144,128]{1,0:T(1,128)}', space=vmem, size = 0x12000, scoped, tag = 'internal scratch']
  %s0 = inlined_call_operand.hbm [shape: f32[8,2,8,256], index: 0, kind: input, shape index: {}, may-alias: {0,4}]
  %s1 = inlined_call_operand.vmem [shape: f32[1,7], index: 1, kind: input, shape index: {}]
  %s2 = inlined_call_operand.vmem [shape: f32[32,7], index: 2, kind: input, shape index: {}]
  %s3 = inlined_call_operand.vmem [shape: bf16[256,32], index: 3, kind: input, shape index: {}]
  %s4 = inlined_call_operand.hbm [shape: f32[8,2,8,256], index: 4, kind: output, shape index: {}, may-alias: {0,4}]
  %s5 = sld [smem:[#allocation0]]
  $region53: #{tpu_custom_call.1} parent=0
    _
  %s7 = ssub.s32 1, %s5
  %s8 = scalar_select 0, %s7, %s5
  $region1: #{tpu_custom_call.1} parent=0
    #allocation2 [shape = 'u8[131072]{0}', space=vmem, size = 0x20000, scoped, tag = 'input window, operand 0']
    #allocation3 [shape = 's32[2]{0}', space=sflag, size = 0x8, scoped, tag = 'scoped memory for tpu_custom_call.1']
    #allocation4 [shape = 's32[2]{0}', space=sflag, size = 0x8, scoped, tag = 'scoped memory for tpu_custom_call.1']
    #allocation5 [shape = 'u8[131072]{0}', space=vmem, size = 0x20000, scoped, tag = 'output window, operand 0']
    %9 = vsyncpa [#allocation3], 0
    %s10 = scalar_lea.sflag [#allocation3], 1
    %11 = vsyncpa %s10, 0
    %12 = vsyncpa [#allocation4], 0
    %s13 = scalar_lea.sflag [#allocation4], 1
    %14 = vsyncpa %s13, 0
    loop: start=0, step=1, limit=4
    $region2: #{tpu_custom_call.1} parent=1 // loop_pre_header
      _
    $region3: #{tpu_custom_call.1} parent=1 // loop_header
      %s16 = sphi 0, %s20
      %p17 = scmp.ge.s32.totalorder %s16, 4
      %s26 = sphi 0, %s28
      %s29 = sphi 0, %s26
      %s30 = sphi 0, %s29
      %s46 = sphi 0, %s30
      %s50 = sphi 0, %s50
      %s52 = sphi 0, %s50
      %s53 = sphi 0, %s52
      %s67 = sphi 0, %s53
      %s71 = sphi 0, %s71
      %s73 = sphi 0, %s71
      %s74 = sphi 0, %s73
      %s88 = sphi 0, %s74
      %s92 = sphi 0, %s92
      %s94 = sphi 0, %s92
      %s95 = sphi 0, %s94
      %s109 = sphi 0, %s95
      %s115 = sphi 0, %s117
      %s118 = sphi 0, %s115
      %s119 = sphi 0, %s118
      %s135 = sphi 0, %s119
    $region4: #{tpu_custom_call.1} parent=1 // loop_header_branch
      %19 = sbr.rel (%p17) target = $region8
    $region5: #{tpu_custom_call.1} parent=1 // loop_body
      %s21 = ssub.s32 %s16, 1
      %s22 = ssub.s32 %s16, 2
      %s23 = sadd.s32 %s16, 1
      %s24 = ssub.s32 %s16, %s23
      %p25 = scmp.eq.s32.totalorder %s24, 0
      %s27 = sadd.s32 %s26, 1
      %s28 = scalar_select %p25, %s26, %s27
      %p31 = pneg %p25
      %p32 = scmp.eq.s32.totalorder %s16, 1
      %p33 = por %p31, %p32
      %p34 = scmp.ne.s32.totalorder %s26, %s29
      %p35 = scmp.eq.s32.totalorder %s16, 0
      %p36 = por %p34, %p35
      %p37 = scmp.ne.s32.totalorder %s26, %s29
      %p38 = scmp.eq.s32.totalorder %s21, 1
      %p39 = por %p37, %p38
      %p40 = scmp.ne.s32.totalorder %s29, %s30
      %p41 = scmp.eq.s32.totalorder %s21, 0
      %p42 = por %p40, %p41
      %p43 = scmp.ne.s32.totalorder %s29, %s30
      %p44 = scmp.eq.s32.totalorder %s22, 1
      %p45 = por %p43, %p44
      %p47 = scmp.ne.s32.totalorder %s30, %s46
      %p48 = scmp.eq.s32.totalorder %s22, 0
      %p49 = por %p47, %p48
      %s51 = sadd.s32 %s50, 1
      %p54 = scmp.eq.s32.totalorder %s16, 1
      %p55 = scmp.ne.s32.totalorder %s50, %s52
      %p56 = scmp.eq.s32.totalorder %s16, 0
      %p57 = por %p55, %p56
      %p58 = scmp.ne.s32.totalorder %s50, %s52
      %p59 = scmp.eq.s32.totalorder %s21, 1
      %p60 = por %p58, %p59
      %p61 = scmp.ne.s32.totalorder %s52, %s53
      %p62 = scmp.eq.s32.totalorder %s21, 0
      %p63 = por %p61, %p62
      %p64 = scmp.ne.s32.totalorder %s52, %s53
      %p65 = scmp.eq.s32.totalorder %s22, 1
      %p66 = por %p64, %p65
      %p68 = scmp.ne.s32.totalorder %s53, %s67
      %p69 = scmp.eq.s32.totalorder %s22, 0
      %p70 = por %p68, %p69
      %s72 = sadd.s32 %s71, 1
      %p75 = scmp.eq.s32.totalorder %s16, 1
      %p76 = scmp.ne.s32.totalorder %s71, %s73
      %p77 = scmp.eq.s32.totalorder %s16, 0
      %p78 = por %p76, %p77
      %p79 = scmp.ne.s32.totalorder %s71, %s73
      %p80 = scmp.eq.s32.totalorder %s21, 1
      %p81 = por %p79, %p80
      %p82 = scmp.ne.s32.totalorder %s73, %s74
      %p83 = scmp.eq.s32.totalorder %s21, 0
      %p84 = por %p82, %p83
      %p85 = scmp.ne.s32.totalorder %s73, %s74
      %p86 = scmp.eq.s32.totalorder %s22, 1
      %p87 = por %p85, %p86
      %p89 = scmp.ne.s32.totalorder %s74, %s88
      %p90 = scmp.eq.s32.totalorder %s22, 0
      %p91 = por %p89, %p90
      %s93 = sadd.s32 %s92, 1
      %p96 = scmp.eq.s32.totalorder %s16, 1
      %p97 = scmp.ne.s32.totalorder %s92, %s94
      %p98 = scmp.eq.s32.totalorder %s16, 0
      %p99 = por %p97, %p98
      %p100 = scmp.ne.s32.totalorder %s92, %s94
      %p101 = scmp.eq.s32.totalorder %s21, 1
      %p102 = por %p100, %p101
      %p103 = scmp.ne.s32.totalorder %s94, %s95
      %p104 = scmp.eq.s32.totalorder %s21, 0
      %p105 = por %p103, %p104
      %p106 = scmp.ne.s32.totalorder %s94, %s95
      %p107 = scmp.eq.s32.totalorder %s22, 1
      %p108 = por %p106, %p107
      %p110 = scmp.ne.s32.totalorder %s95, %s109
      %p111 = scmp.eq.s32.totalorder %s22, 0
      %p112 = por %p110, %p111
      %s113 = ssub.s32 %s16, %s23
      %p114 = scmp.eq.s32.totalorder %s113, 0
      %s116 = sadd.s32 %s115, 1
      %s117 = scalar_select %p114, %s115, %s116
      %p120 = pneg %p114
      %p121 = scmp.eq.s32.totalorder %s16, 1
      %p122 = por %p120, %p121
      %p123 = scmp.ne.s32.totalorder %s115, %s118
      %p124 = scmp.eq.s32.totalorder %s16, 0
      %p125 = por %p123, %p124
      %p126 = scmp.ne.s32.totalorder %s115, %s118
      %p127 = scmp.eq.s32.totalorder %s21, 1
      %p128 = por %p126, %p127
      %p129 = scmp.ne.s32.totalorder %s118, %s119
      %p130 = scmp.eq.s32.totalorder %s21, 0
      %p131 = por %p129, %p130
      %p132 = scmp.ne.s32.totalorder %s118, %s119
      %p133 = scmp.eq.s32.totalorder %s22, 1
      %p134 = por %p132, %p133
      %p136 = scmp.ne.s32.totalorder %s119, %s135
      %p137 = scmp.eq.s32.totalorder %s22, 0
      %p138 = por %p136, %p137
      %p139 = scmp.le.s32.totalorder 1, %s16
      %p140 = scmp.lt.s32.totalorder %s16, 3
      %p141 = pnand %p139, %p140
      %p142 = pneg %p141
      // Predicated region
      $region9: #{tpu_custom_call.1} parent=5 // pred_check
        _
      $region10: #{tpu_custom_call.1} parent=5 // pred_check_branch
        %144 = sbr.rel (%p141) target = $region12
      $region11: #{tpu_custom_call.1} parent=5 // pred_region
        %s145 = ssub.s32 %s16, 1
        // Predicated region
        $region13: #{tpu_custom_call.1} parent=11 // pred_check
          %p146 = pneg %p63
        $region14: #{tpu_custom_call.1} parent=11 // pred_check_branch
          %148 = sbr.rel (%p146) target = $region16
        $region15: #{tpu_custom_call.1} parent=11 // pred_region
          _
        $region16: #{tpu_custom_call.1} parent=11 // pred_fallthru
          _
        // Predicated region
        $region17: #{tpu_custom_call.1} parent=11 // pred_check
          %p149 = pneg %p84
        $region18: #{tpu_custom_call.1} parent=11 // pred_check_branch
          %151 = sbr.rel (%p149) target = $region20
        $region19: #{tpu_custom_call.1} parent=11 // pred_region
          _
        $region20: #{tpu_custom_call.1} parent=11 // pred_fallthru
          _
        // Predicated region
        $region21: #{tpu_custom_call.1} parent=11 // pred_check
          %p152 = pneg %p105
        $region22: #{tpu_custom_call.1} parent=11 // pred_check_branch
          %154 = sbr.rel (%p152) target = $region24
        $region23: #{tpu_custom_call.1} parent=11 // pred_region
          _
        $region24: #{tpu_custom_call.1} parent=11 // pred_fallthru
          _
      $region12: #{tpu_custom_call.1} parent=5 // pred_fallthru
        _
      %p155 = scmp.lt.s32.totalorder %s16, 2
      // Predicated region
      $region25: #{tpu_custom_call.1} parent=5 // pred_check
        %p156 = pneg %p155
      $region26: #{tpu_custom_call.1} parent=5 // pred_check_branch
        %158 = sbr.rel (%p156) target = $region28
      $region27: #{tpu_custom_call.1} parent=5 // pred_region
        // Predicated region
        $region29: #{tpu_custom_call.1} parent=27 // pred_check
          %p159 = pneg %p36
        $region30: #{tpu_custom_call.1} parent=27 // pred_check_branch
          %161 = sbr.rel (%p159) target = $region32
        $region31: #{tpu_custom_call.1} parent=27 // pred_region
          %s162 = sand.u32 %s26, 1
          %s163 = scalar_lea.sflag [#allocation3], %s162
          %s164 = sand.u32 %s26, 1
          %s165 = smul.addr %s164, 128
          %s166 = scalar_lea.vmem [#allocation2], %s165
          %s167 = smul.u32 4, %s16
          %s169 = ssub.s32 2048, 2048
          %170 = vsyncadd %s163, %s169
          %s171 = smul.addr %s167, 4
          %s172 = smul.addr %s171, 128
          %s173 = scalar_lea.hbm %s0, %s172
          %s174 = sshll.u32 %s166, 4
          %s175 = int_to_ptr.vmem [resolvable:$true] %s174
          %180 = dma.hbm_to_vmem [thread:$0]  %s173, 2048, %s175, %s163, 256, 256, 16
        $region32: #{tpu_custom_call.1} parent=27 // pred_fallthru
          _
      $region28: #{tpu_custom_call.1} parent=5 // pred_fallthru
        _
      %p181 = scmp.le.s32.totalorder 1, %s16
      %p182 = scmp.lt.s32.totalorder %s16, 3
      %p183 = pnand %p181, %p182
      %p184 = pneg %p183
      // Predicated region
      $region33: #{tpu_custom_call.1} parent=5 // pred_check
        _
      $region34: #{tpu_custom_call.1} parent=5 // pred_check_branch
        %186 = sbr.rel (%p183) target = $region36
      $region35: #{tpu_custom_call.1} parent=5 // pred_region
        %s187 = ssub.s32 %s16, 1
        %s188 = sand.u32 %s29, 1
        %s189 = scalar_lea.sflag [#allocation3], %s188
        %s190 = sand.u32 %s29, 1
        %s191 = smul.addr %s190, 128
        %s192 = scalar_lea.vmem [#allocation2], %s191
        // Predicated region
        $region37: #{tpu_custom_call.1} parent=35 // pred_check
          %p193 = pneg %p42
        $region38: #{tpu_custom_call.1} parent=35 // pred_check_branch
          %195 = sbr.rel (%p193) target = $region40
        $region39: #{tpu_custom_call.1} parent=35 // pred_region
          %196 = dma.done %s189, 2048
        $region40: #{tpu_custom_call.1} parent=35 // pred_fallthru
          _
        %s197 = sand.u32 %s29, 1
        %s198 = scalar_lea.sflag [#allocation3], %s197
        %s199 = sand.u32 %s29, 1
        %s200 = smul.addr %s199, 128
        %s201 = scalar_lea.vmem [#allocation2], %s200
        %p202 = pneg %p42
        %p203 = pneg %p39
        %p204 = pneg %p63
        %p205 = pneg %p60
        %p206 = pneg %p84
        %p207 = pneg %p81
        %p208 = pneg %p105
        %p209 = pneg %p102
        %p210 = pneg %p131
        %p211 = pneg %p128
        %s212 = sand.u32 %s118, 1
        %s213 = scalar_lea.sflag [#allocation4], %s212
        %s214 = sand.u32 %s118, 1
        %s215 = smul.addr %s214, 128
        %s216 = scalar_lea.vmem [#allocation5], %s215
        %s217 = smul.u32 4, %s21
        %s218 = smul.u32 4, %s21
        %v220 = vld [vmem:[%s192] sm:$0xff]
        %v221 = vld [vmem:[%s192 + $0x8] sm:$0xff]
        %v222 = vld [vmem:[%s192 + $0x20] sm:$0xff]
        %v223 = vld [vmem:[%s192 + $0x28] sm:$0xff]
        %v224 = vld [vmem:[%s192 + $0x40] sm:$0xff]
        %v225 = vld [vmem:[%s192 + $0x48] sm:$0xff]
        %v226 = vld [vmem:[%s192 + $0x60] sm:$0xff]
        %v227 = vld [vmem:[%s192 + $0x68] sm:$0xff]
        %v228 = vadd.f32 %v220, %v221
        %229 = vadd.xlane.f32.xlu0 %v228
        %v230 = vpop.xlane.xlu0 %229
        %v231 = vadd.f32 %v222, %v223
        %232 = vadd.xlane.f32.xlu0 %v231
        %v233 = vpop.xlane.xlu0 %232
        %v234 = vadd.f32 %v224, %v225
        %235 = vadd.xlane.f32.xlu0 %v234
        %v236 = vpop.xlane.xlu0 %235
        %v237 = vadd.f32 %v226, %v227
        %238 = vadd.xlane.f32.xlu0 %v237
        %v239 = vpop.xlane.xlu0 %238
        %v240 = vrcp.pop 256.0
        %v241 = vmul.f32 %v230, %v240
        %v242 = vmul.f32 %v233, %v240
        %v243 = vmul.f32 %v236, %v240
        %v244 = vmul.f32 %v239, %v240
        %v245 = vmul.f32 %v241, 1.15
        %v246 = vmul.f32 %v242, 1.15
        %v247 = vmul.f32 %v243, 1.15
        %v248 = vmul.f32 %v244, 1.15
        %v249 = vmax.f32 %v220, %v221
        %250 = vmax.xlane.f32.xlu0 %v249
        %v251 = vpop.xlane.xlu0 %250
        %v252 = vmax.f32 %v222, %v223
        %253 = vmax.xlane.f32.xlu0 %v252
        %v254 = vpop.xlane.xlu0 %253
        %v255 = vmax.f32 %v224, %v225
        %256 = vmax.xlane.f32.xlu0 %v255
        %v257 = vpop.xlane.xlu0 %256
        %v258 = vmax.f32 %v226, %v227
        %259 = vmax.xlane.f32.xlu0 %v258
        %v260 = vpop.xlane.xlu0 %259
        %v261 = vmul.f32 %v251, 0.25
        %v262 = vmul.f32 %v254, 0.25
        %v263 = vmul.f32 %v257, 0.25
        %v264 = vmul.f32 %v260, 0.25
        %v265 = vadd.f32 %v245, %v261
        %v266 = vadd.f32 %v246, %v262
        %v267 = vadd.f32 %v247, %v263
        %v268 = vadd.f32 %v248, %v264
        %v269 = vld [vmem:[%s1] sm:$0x1]
        %v274 = vlaneseq
        %v275 = vand.u32 %v274, 127
        %v276 = vadd.s32 %v275, 4294967293
        %v277 = vlaneseq
        %v278 = vshrl.u32 %v277, 7
        %v279 = vsub.s32 %v276, %v278
        %v280 = vrot.slane %v265, %v279
        %v281 = vlaneseq
        %v282 = vshrl.u32 %v281, 7
        %v283 = vsub.s32 %v276, %v282
        %v284 = vrot.slane %v266, %v283
        %v285 = vlaneseq
        %v286 = vshrl.u32 %v285, 7
        %v287 = vsub.s32 %v276, %v286
        %v288 = vrot.slane %v267, %v287
        %v289 = vlaneseq
        %v290 = vshrl.u32 %v289, 7
        %v291 = vsub.s32 %v276, %v290
        %v292 = vrot.slane %v268, %v291
        %vm293 = vcmask 1041409
        %v294 = vsel %vm293, %v284, %v280
        %vm295 = vcmask 1042434
        %v296 = vsel %vm295, %v288, %v294
        %vm297 = vcmask 1043459
        %v298 = vsel %vm297, %v292, %v296
        %vm300 = vcmask 23552
        %v301 = vsel %vm300, 0.0, %v298
        %vm302 = vcmask 89088
        %v303 = vsel %vm302, %v301, 0.0
        %v305 = vlaneseq
        %v306 = vshrl.u32 %v305, 7
        %v307 = vsub.s32 0, %v306
        %v308 = vrot.slane %v269, %v307
        %309 = vset.pattern.permute.xlu0 0
        %310 = vperm.xlu0 %309, %v308
        %v311 = vpop.permute.xlu0 %310
        %v313 = vmul.f32 %v311, %v303
        %314 = vset.pattern.permute.xlu0 1
        %315 = vperm.xlu0 %314, %v308
        %v316 = vpop.permute.xlu0 %315
        %v318 = vmul.f32 %v316, %v303
        %320 = vrot.lane.b32.xlu0 %v318, 127
        %v321 = vpop.permute.xlu0 %320
        %v323 = vadd.f32 %v313, %v321
        %324 = vset.pattern.permute.xlu0 2
        %325 = vperm.xlu0 %324, %v308
        %v326 = vpop.permute.xlu0 %325
        %v328 = vmul.f32 %v326, %v303
        %330 = vrot.lane.b32.xlu0 %v328, 126
        %v331 = vpop.permute.xlu0 %330
        %v333 = vadd.f32 %v323, %v331
        %334 = vset.pattern.permute.xlu0 3
        %335 = vperm.xlu0 %334, %v308
        %v336 = vpop.permute.xlu0 %335
        %v338 = vmul.f32 %v336, %v303
        %340 = vrot.lane.b32.xlu0 %v338, 125
        %v341 = vpop.permute.xlu0 %340
        %v343 = vadd.f32 %v333, %v341
        %344 = vset.pattern.permute.xlu0 4
        %345 = vperm.xlu0 %344, %v308
        %v346 = vpop.permute.xlu0 %345
        %v348 = vmul.f32 %v346, %v303
        %350 = vrot.lane.b32.xlu0 %v348, 124
        %v351 = vpop.permute.xlu0 %350
        %v353 = vadd.f32 %v343, %v351
        %354 = vset.pattern.permute.xlu0 5
        %355 = vperm.xlu0 %354, %v308
        %v356 = vpop.permute.xlu0 %355
        %v358 = vmul.f32 %v356, %v303
        %360 = vrot.lane.b32.xlu0 %v358, 123
        %v361 = vpop.permute.xlu0 %360
        %v363 = vadd.f32 %v353, %v361
        %364 = vset.pattern.permute.xlu0 6
        %365 = vperm.xlu0 %364, %v308
        %v366 = vpop.permute.xlu0 %365
        %v368 = vmul.f32 %v366, %v303
        %370 = vrot.lane.b32.xlu0 %v368, 122
        %v371 = vpop.permute.xlu0 %370
        %v373 = vadd.f32 %v363, %v371
        %v374 = vand.u32 2147483647, %v373
        %v375 = vsub.f32 0.0, %v374
        %v376 = vmul.f32 %v375, 1.442695
        %v377 = vpow.pop %v376
        %vm378 = vcmp.ge.f32.partialorder %v373, 0.0
        %v379 = vadd.f32 %v377, 1.0
        %v380 = vrcp.pop %v379
        %v381 = vmul.f32 1.0, %v380
        %v382 = vmul.f32 %v377, %v380
        %v383 = vsel %vm378, %v381, %v382
        %v384 = vlaneseq
        %v385 = vshrl.u32 %v384, 7
        %v386 = vsub.s32 0, %v385
        %v387 = vrot.slane %v383, %v386
        %389 = vbcast.lane.b32.xlu0 %v387, 256
        %v390 = vpop.permute.xlu0 %389
        %v391 = vlaneseq
        %v392 = vshrl.u32 %v391, 7
        %v393 = vsub.s32 1, %v392
        %v394 = vrot.slane %v383, %v393
        %396 = vbcast.lane.b32.xlu0 %v394, 256
        %v397 = vpop.permute.xlu0 %396
        %v398 = vlaneseq
        %v399 = vshrl.u32 %v398, 7
        %v400 = vsub.s32 2, %v399
        %v401 = vrot.slane %v383, %v400
        %403 = vbcast.lane.b32.xlu0 %v401, 256
        %v404 = vpop.permute.xlu0 %403
        %v405 = vlaneseq
        %v406 = vshrl.u32 %v405, 7
        %v407 = vsub.s32 3, %v406
        %v408 = vrot.slane %v383, %v407
        %410 = vbcast.lane.b32.xlu0 %v408, 256
        %v411 = vpop.permute.xlu0 %410
        %v412 = vmul.f32 %v220, %v390
        %v413 = vmul.f32 %v221, %v390
        %v414 = vmul.f32 %v222, %v397
        %v415 = vmul.f32 %v223, %v397
        %v416 = vmul.f32 %v224, %v404
        %v417 = vmul.f32 %v225, %v404
        %v418 = vmul.f32 %v226, %v411
        %v419 = vmul.f32 %v227, %v411
        %420 = vst [vmem:[%s216] sm:$0xff] %v412
        %421 = vst [vmem:[%s216 + $0x8] sm:$0xff] %v413
        %422 = vst [vmem:[%s216 + $0x20] sm:$0xff] %v414
        %423 = vst [vmem:[%s216 + $0x28] sm:$0xff] %v415
        %424 = vst [vmem:[%s216 + $0x40] sm:$0xff] %v416
        %425 = vst [vmem:[%s216 + $0x48] sm:$0xff] %v417
        %426 = vst [vmem:[%s216 + $0x60] sm:$0xff] %v418
        %427 = vst [vmem:[%s216 + $0x68] sm:$0xff] %v419
        %v428 = vld [vmem:[%s3] sm:$0xf]
        %v429 = vld [vmem:[%s3 + $0x4] sm:$0xf]
        %v430 = vld [vmem:[%s3 + $0x8] sm:$0xf]
        %v431 = vld [vmem:[%s3 + $0xc] sm:$0xf]
        %v432 = vld [vmem:[%s3 + $0x10] sm:$0xf]
        %v433 = vld [vmem:[%s3 + $0x14] sm:$0xf]
        %v434 = vld [vmem:[%s3 + $0x18] sm:$0xf]
        %v435 = vld [vmem:[%s3 + $0x1c] sm:$0xf]
        %v436 = vld [vmem:[%s3 + $0x20] sm:$0xf]
        %v437 = vld [vmem:[%s3 + $0x24] sm:$0xf]
        %v438 = vld [vmem:[%s3 + $0x28] sm:$0xf]
        %v439 = vld [vmem:[%s3 + $0x2c] sm:$0xf]
        %v440 = vld [vmem:[%s3 + $0x30] sm:$0xf]
        %v441 = vld [vmem:[%s3 + $0x34] sm:$0xf]
        %v442 = vld [vmem:[%s3 + $0x38] sm:$0xf]
        %v443 = vld [vmem:[%s3 + $0x3c] sm:$0xf]
        %v444 = vld [vmem:[%s3 + $0x40] sm:$0xf]
        %v445 = vld [vmem:[%s3 + $0x44] sm:$0xf]
        %v446 = vld [vmem:[%s3 + $0x48] sm:$0xf]
        %v447 = vld [vmem:[%s3 + $0x4c] sm:$0xf]
        %v448 = vld [vmem:[%s3 + $0x50] sm:$0xf]
        %v449 = vld [vmem:[%s3 + $0x54] sm:$0xf]
        %v450 = vld [vmem:[%s3 + $0x58] sm:$0xf]
        %v451 = vld [vmem:[%s3 + $0x5c] sm:$0xf]
        %v452 = vld [vmem:[%s3 + $0x60] sm:$0xf]
        %v453 = vld [vmem:[%s3 + $0x64] sm:$0xf]
        %v454 = vld [vmem:[%s3 + $0x68] sm:$0xf]
        %v455 = vld [vmem:[%s3 + $0x6c] sm:$0xf]
        %v456 = vld [vmem:[%s3 + $0x70] sm:$0xf]
        %v457 = vld [vmem:[%s3 + $0x74] sm:$0xf]
        %v458 = vld [vmem:[%s3 + $0x78] sm:$0xf]
        %v459 = vld [vmem:[%s3 + $0x7c] sm:$0xf]
        %s460 = scalar_lea.vmem %s192, 16 [#allocation2]
        %v461 = vld [vmem:[%s460] sm:$0xff]
        %v462 = vld [vmem:[%s460 + $0x8] sm:$0xff]
        %v463 = vld [vmem:[%s460 + $0x20] sm:$0xff]
        %v464 = vld [vmem:[%s460 + $0x28] sm:$0xff]
        %v465 = vld [vmem:[%s460 + $0x40] sm:$0xff]
        %v466 = vld [vmem:[%s460 + $0x48] sm:$0xff]
        %v467 = vld [vmem:[%s460 + $0x60] sm:$0xff]
        %v468 = vld [vmem:[%s460 + $0x68] sm:$0xff]
        %v469 = vpack.c.bf16 %v463, %v461
        %v470 = vpack.c.bf16 %v464, %v462
        %v471 = vpack.c.bf16 %v467, %v465
        %v472 = vpack.c.bf16 %v468, %v466
        %v473 = vunpack.c.l.bf16 %v469
        %v474 = vunpack.c.l.bf16 %v470
        %v475 = vunpack.c.h.bf16 %v469
        %v476 = vunpack.c.h.bf16 %v470
        %v477 = vunpack.c.l.bf16 %v471
        %v478 = vunpack.c.l.bf16 %v472
        %v479 = vunpack.c.h.bf16 %v471
        %v480 = vunpack.c.h.bf16 %v472
        %v481 = vsub.f32 %v461, %v473
        %v482 = vsub.f32 %v462, %v474
        %v483 = vsub.f32 %v463, %v475
        %v484 = vsub.f32 %v464, %v476
        %v485 = vsub.f32 %v465, %v477
        %v486 = vsub.f32 %v466, %v478
        %v487 = vsub.f32 %v467, %v479
        %v488 = vsub.f32 %v468, %v480
        %v489 = vpack.c.bf16 %v483, %v481
        %v490 = vpack.c.bf16 %v484, %v482
        %v491 = vpack.c.bf16 %v487, %v485
        %v492 = vpack.c.bf16 %v488, %v486
        %v525 = vunpack.c.l.b16 %v428
        %v526 = vunpack.c.l.b16 %v429
        %v527 = vunpack.c.l.b16 %v430
        %v528 = vunpack.c.l.b16 %v431
        %v529 = vunpack.c.l.b16 %v432
        %v530 = vunpack.c.l.b16 %v433
        %v531 = vunpack.c.l.b16 %v434
        %v532 = vunpack.c.l.b16 %v435
        %v533 = vunpack.c.l.b16 %v436
        %v534 = vunpack.c.l.b16 %v437
        %v535 = vunpack.c.l.b16 %v438
        %v536 = vunpack.c.l.b16 %v439
        %v537 = vunpack.c.l.b16 %v440
        %v538 = vunpack.c.l.b16 %v441
        %v539 = vunpack.c.l.b16 %v442
        %v540 = vunpack.c.l.b16 %v443
        %v541 = vunpack.c.l.b16 %v444
        %v542 = vunpack.c.l.b16 %v445
        %v543 = vunpack.c.l.b16 %v446
        %v544 = vunpack.c.l.b16 %v447
        %v545 = vunpack.c.l.b16 %v448
        %v546 = vunpack.c.l.b16 %v449
        %v547 = vunpack.c.l.b16 %v450
        %v548 = vunpack.c.l.b16 %v451
        %v549 = vunpack.c.l.b16 %v452
        %v550 = vunpack.c.l.b16 %v453
        %v551 = vunpack.c.l.b16 %v454
        %v552 = vunpack.c.l.b16 %v455
        %v553 = vunpack.c.l.b16 %v456
        %v554 = vunpack.c.l.b16 %v457
        %v555 = vunpack.c.l.b16 %v458
        %v556 = vunpack.c.l.b16 %v459
        %v557 = vpack.c.b16 %v526, %v525
        %v558 = vpack.c.b16 %v528, %v527
        %v559 = vpack.c.b16 %v530, %v529
        %v560 = vpack.c.b16 %v532, %v531
        %v561 = vpack.c.b16 %v534, %v533
        %v562 = vpack.c.b16 %v536, %v535
        %v563 = vpack.c.b16 %v538, %v537
        %v564 = vpack.c.b16 %v540, %v539
        %v565 = vpack.c.b16 %v542, %v541
        %v566 = vpack.c.b16 %v544, %v543
        %v567 = vpack.c.b16 %v546, %v545
        %v568 = vpack.c.b16 %v548, %v547
        %v569 = vpack.c.b16 %v550, %v549
        %v570 = vpack.c.b16 %v552, %v551
        %v571 = vpack.c.b16 %v554, %v553
        %v572 = vpack.c.b16 %v556, %v555
        %589 = vmatprep.subr.bf16.mxu0 0
        %590 = vmatpush1.bf16.msra.mxu0 %v564
        %591 = vmatprep.subr.bf16.mxu0 0
        %592 = vmatpush1.bf16.msra.mxu0 %v563
        %593 = vmatprep.subr.bf16.mxu0 0
        %594 = vmatpush1.bf16.msra.mxu0 %v562
        %595 = vmatprep.subr.bf16.mxu0 0
        %596 = vmatpush1.bf16.msra.mxu0 %v561
        %597 = vmatprep.subr.bf16.mxu0 0
        %598 = vmatpush1.bf16.msra.mxu0 %v560
        %599 = vmatprep.subr.bf16.mxu0 0
        %600 = vmatpush1.bf16.msra.mxu0 %v559
        %601 = vmatprep.subr.bf16.mxu0 0
        %602 = vmatpush1.bf16.msra.mxu0 %v558
        %603 = vmatprep.subr.bf16.mxu0 0
        %604 = vmatpush1.bf16.msra.mxu0 %v557
        %605 = vmatprep.subr.bf16.mxu0 0
        %606 = vmatpush2.bf16.msra.mxu0 %v572
        %607 = vmatprep.subr.bf16.mxu0 0
        %608 = vmatpush2.bf16.msra.mxu0 %v571
        %609 = vmatprep.subr.bf16.mxu0 0
        %610 = vmatpush2.bf16.msra.mxu0 %v570
        %611 = vmatprep.subr.bf16.mxu0 0
        %612 = vmatpush2.bf16.msra.mxu0 %v569
        %613 = vmatprep.subr.bf16.mxu0 0
        %614 = vmatpush2.bf16.msra.mxu0 %v568
        %615 = vmatprep.subr.bf16.mxu0 0
        %616 = vmatpush2.bf16.msra.mxu0 %v567
        %617 = vmatprep.subr.bf16.mxu0 0
        %618 = vmatpush2.bf16.msra.mxu0 %v566
        %619 = vmatprep.subr.bf16.mxu0 0
        %620 = vmatpush2.bf16.msra.mxu0 %v565
        %621 = vmatprep.mubr.bf16.mxu0 %v470
        %622 = vmatmul.mubr.bf16.gmra.mxu0 %v469
        %v623 = vpop.f32.mrf.mxu0
        %v624 = vadd.f32 0.0, %v623
        %v625 = vpop.f32.mrf.mxu0
        %v626 = vpop.f32.mrf.mxu0
        %v627 = vadd.f32 0.0, %v626
        %v628 = vpop.f32.mrf.mxu0
        %629 = vmatprep.mubr.bf16.mxu0 %v472
        %630 = vmatmul.mubr.bf16.gmra.mxu0 %v471
        %v631 = vpop.f32.mrf.mxu0
        %v632 = vadd.f32 0.0, %v631
        %v633 = vpop.f32.mrf.mxu0
        %v634 = vpop.f32.mrf.mxu0
        %v635 = vadd.f32 0.0, %v634
        %v636 = vpop.f32.mrf.mxu0
        %637 = vmatprep.mubr.bf16.mxu0 %v490
        %638 = vmatmul.mubr.bf16.gmra.mxu0 %v489
        %v639 = vpop.f32.mrf.mxu0
        %v640 = vadd.f32 0.0, %v639
        %v641 = vpop.f32.mrf.mxu0
        %v642 = vpop.f32.mrf.mxu0
        %v643 = vadd.f32 0.0, %v642
        %v644 = vpop.f32.mrf.mxu0
        %645 = vmatprep.mubr.bf16.mxu0 %v492
        %646 = vmatmul.mubr.bf16.gmra.mxu0 %v491
        %v647 = vpop.f32.mrf.mxu0
        %v648 = vadd.f32 0.0, %v647
        %v649 = vpop.f32.mrf.mxu0
        %v650 = vpop.f32.mrf.mxu0
        %v651 = vadd.f32 0.0, %v650
        %v652 = vpop.f32.mrf.mxu0
        %653 = vdwg.mxu0
        %v654 = vadd.f32 %v624, %v640
        %v655 = vadd.f32 %v627, %v643
        %v656 = vadd.f32 %v632, %v648
        %v657 = vadd.f32 %v635, %v651
        %v658 = vmul.f32 %v654, 0.0625
        %v659 = vmul.f32 %v655, 0.0625
        %v660 = vmul.f32 %v656, 0.0625
        %v661 = vmul.f32 %v657, 0.0625
        %v662 = vld [vmem:[%s2] sm:$0xff]
        %v663 = vld [vmem:[%s2 + $0x8] sm:$0xff]
        %v664 = vld [vmem:[%s2 + $0x10] sm:$0xff]
        %v665 = vld [vmem:[%s2 + $0x18] sm:$0xff]
        %670 = vrot.lane.b32.xlu0 %v658, 3
        %v671 = vpop.permute.xlu0 %670
        %672 = vrot.lane.b32.xlu0 %v659, 3
        %v673 = vpop.permute.xlu0 %672
        %674 = vrot.lane.b32.xlu0 %v660, 3
        %v675 = vpop.permute.xlu0 %674
        %676 = vrot.lane.b32.xlu0 %v661, 3
        %v677 = vpop.permute.xlu0 %676
        %v682 = vsel %vm300, 0.0, %v671
        %v683 = vsel %vm300, 0.0, %v673
        %v684 = vsel %vm300, 0.0, %v675
        %v685 = vsel %vm300, 0.0, %v677
        %vm686 = vcmask 154624
        %v687 = vsel %vm686, %v682, 0.0
        %v688 = vsel %vm686, %v683, 0.0
        %v689 = vsel %vm686, %v684, 0.0
        %v690 = vsel %vm686, %v685, 0.0
        %692 = vset.pattern.permute.xlu0 0
        %693 = vperm.xlu0 %692, %v662
        %v694 = vpop.permute.xlu0 %693
        %697 = vset.pattern.permute.xlu0 0
        %698 = vperm.xlu0 %697, %v663
        %v699 = vpop.permute.xlu0 %698
        %702 = vset.pattern.permute.xlu0 0
        %703 = vperm.xlu0 %702, %v664
        %v704 = vpop.permute.xlu0 %703
        %707 = vset.pattern.permute.xlu0 0
        %708 = vperm.xlu0 %707, %v665
        %v709 = vpop.permute.xlu0 %708
        %v711 = vmul.f32 %v694, %v687
        %v712 = vmul.f32 %v699, %v688
        %v713 = vmul.f32 %v704, %v689
        %v714 = vmul.f32 %v709, %v690
        %715 = vset.pattern.permute.xlu0 1
        %716 = vperm.xlu0 %715, %v662
        %v717 = vpop.permute.xlu0 %716
        %719 = vset.pattern.permute.xlu0 1
        %720 = vperm.xlu0 %719, %v663
        %v721 = vpop.permute.xlu0 %720
        %723 = vset.pattern.permute.xlu0 1
        %724 = vperm.xlu0 %723, %v664
        %v725 = vpop.permute.xlu0 %724
        %727 = vset.pattern.permute.xlu0 1
        %728 = vperm.xlu0 %727, %v665
        %v729 = vpop.permute.xlu0 %728
        %v731 = vmul.f32 %v717, %v687
        %v732 = vmul.f32 %v721, %v688
        %v733 = vmul.f32 %v725, %v689
        %v734 = vmul.f32 %v729, %v690
        %739 = vrot.lane.b32.xlu0 %v731, 127
        %v740 = vpop.permute.xlu0 %739
        %741 = vrot.lane.b32.xlu0 %v732, 127
        %v742 = vpop.permute.xlu0 %741
        %743 = vrot.lane.b32.xlu0 %v733, 127
        %v744 = vpop.permute.xlu0 %743
        %745 = vrot.lane.b32.xlu0 %v734, 127
        %v746 = vpop.permute.xlu0 %745
        %v751 = vadd.f32 %v711, %v740
        %v752 = vadd.f32 %v712, %v742
        %v753 = vadd.f32 %v713, %v744
        %v754 = vadd.f32 %v714, %v746
        %755 = vset.pattern.permute.xlu0 2
        %756 = vperm.xlu0 %755, %v662
        %v757 = vpop.permute.xlu0 %756
        %759 = vset.pattern.permute.xlu0 2
        %760 = vperm.xlu0 %759, %v663
        %v761 = vpop.permute.xlu0 %760
        %763 = vset.pattern.permute.xlu0 2
        %764 = vperm.xlu0 %763, %v664
        %v765 = vpop.permute.xlu0 %764
        %767 = vset.pattern.permute.xlu0 2
        %768 = vperm.xlu0 %767, %v665
        %v769 = vpop.permute.xlu0 %768
        %v771 = vmul.f32 %v757, %v687
        %v772 = vmul.f32 %v761, %v688
        %v773 = vmul.f32 %v765, %v689
        %v774 = vmul.f32 %v769, %v690
        %779 = vrot.lane.b32.xlu0 %v771, 126
        %v780 = vpop.permute.xlu0 %779
        %781 = vrot.lane.b32.xlu0 %v772, 126
        %v782 = vpop.permute.xlu0 %781
        %783 = vrot.lane.b32.xlu0 %v773, 126
        %v784 = vpop.permute.xlu0 %783
        %785 = vrot.lane.b32.xlu0 %v774, 126
        %v786 = vpop.permute.xlu0 %785
        %v791 = vadd.f32 %v751, %v780
        %v792 = vadd.f32 %v752, %v782
        %v793 = vadd.f32 %v753, %v784
        %v794 = vadd.f32 %v754, %v786
        %795 = vset.pattern.permute.xlu0 3
        %796 = vperm.xlu0 %795, %v662
        %v797 = vpop.permute.xlu0 %796
        %799 = vset.pattern.permute.xlu0 3
        %800 = vperm.xlu0 %799, %v663
        %v801 = vpop.permute.xlu0 %800
        %803 = vset.pattern.permute.xlu0 3
        %804 = vperm.xlu0 %803, %v664
        %v805 = vpop.permute.xlu0 %804
        %807 = vset.pattern.permute.xlu0 3
        %808 = vperm.xlu0 %807, %v665
        %v809 = vpop.permute.xlu0 %808
        %v811 = vmul.f32 %v797, %v687
        %v812 = vmul.f32 %v801, %v688
        %v813 = vmul.f32 %v805, %v689
        %v814 = vmul.f32 %v809, %v690
        %819 = vrot.lane.b32.xlu0 %v811, 125
        %v820 = vpop.permute.xlu0 %819
        %821 = vrot.lane.b32.xlu0 %v812, 125
        %v822 = vpop.permute.xlu0 %821
        %823 = vrot.lane.b32.xlu0 %v813, 125
        %v824 = vpop.permute.xlu0 %823
        %825 = vrot.lane.b32.xlu0 %v814, 125
        %v826 = vpop.permute.xlu0 %825
        %v831 = vadd.f32 %v791, %v820
        %v832 = vadd.f32 %v792, %v822
        %v833 = vadd.f32 %v793, %v824
        %v834 = vadd.f32 %v794, %v826
        %835 = vset.pattern.permute.xlu0 4
        %836 = vperm.xlu0 %835, %v662
        %v837 = vpop.permute.xlu0 %836
        %839 = vset.pattern.permute.xlu0 4
        %840 = vperm.xlu0 %839, %v663
        %v841 = vpop.permute.xlu0 %840
        %843 = vset.pattern.permute.xlu0 4
        %844 = vperm.xlu0 %843, %v664
        %v845 = vpop.permute.xlu0 %844
        %847 = vset.pattern.permute.xlu0 4
        %848 = vperm.xlu0 %847, %v665
        %v849 = vpop.permute.xlu0 %848
        %v851 = vmul.f32 %v837, %v687
        %v852 = vmul.f32 %v841, %v688
        %v853 = vmul.f32 %v845, %v689
        %v854 = vmul.f32 %v849, %v690
        %859 = vrot.lane.b32.xlu0 %v851, 124
        %v860 = vpop.permute.xlu0 %859
        %861 = vrot.lane.b32.xlu0 %v852, 124
        %v862 = vpop.permute.xlu0 %861
        %863 = vrot.lane.b32.xlu0 %v853, 124
        %v864 = vpop.permute.xlu0 %863
        %865 = vrot.lane.b32.xlu0 %v854, 124
        %v866 = vpop.permute.xlu0 %865
        %v871 = vadd.f32 %v831, %v860
        %v872 = vadd.f32 %v832, %v862
        %v873 = vadd.f32 %v833, %v864
        %v874 = vadd.f32 %v834, %v866
        %875 = vset.pattern.permute.xlu0 5
        %876 = vperm.xlu0 %875, %v662
        %v877 = vpop.permute.xlu0 %876
        %879 = vset.pattern.permute.xlu0 5
        %880 = vperm.xlu0 %879, %v663
        %v881 = vpop.permute.xlu0 %880
        %883 = vset.pattern.permute.xlu0 5
        %884 = vperm.xlu0 %883, %v664
        %v885 = vpop.permute.xlu0 %884
        %887 = vset.pattern.permute.xlu0 5
        %888 = vperm.xlu0 %887, %v665
        %v889 = vpop.permute.xlu0 %888
        %v891 = vmul.f32 %v877, %v687
        %v892 = vmul.f32 %v881, %v688
        %v893 = vmul.f32 %v885, %v689
        %v894 = vmul.f32 %v889, %v690
        %899 = vrot.lane.b32.xlu0 %v891, 123
        %v900 = vpop.permute.xlu0 %899
        %901 = vrot.lane.b32.xlu0 %v892, 123
        %v902 = vpop.permute.xlu0 %901
        %903 = vrot.lane.b32.xlu0 %v893, 123
        %v904 = vpop.permute.xlu0 %903
        %905 = vrot.lane.b32.xlu0 %v894, 123
        %v906 = vpop.permute.xlu0 %905
        %v911 = vadd.f32 %v871, %v900
        %v912 = vadd.f32 %v872, %v902
        %v913 = vadd.f32 %v873, %v904
        %v914 = vadd.f32 %v874, %v906
        %915 = vset.pattern.permute.xlu0 6
        %916 = vperm.xlu0 %915, %v662
        %v917 = vpop.permute.xlu0 %916
        %919 = vset.pattern.permute.xlu0 6
        %920 = vperm.xlu0 %919, %v663
        %v921 = vpop.permute.xlu0 %920
        %923 = vset.pattern.permute.xlu0 6
        %924 = vperm.xlu0 %923, %v664
        %v925 = vpop.permute.xlu0 %924
        %927 = vset.pattern.permute.xlu0 6
        %928 = vperm.xlu0 %927, %v665
        %v929 = vpop.permute.xlu0 %928
        %v931 = vmul.f32 %v917, %v687
        %v932 = vmul.f32 %v921, %v688
        %v933 = vmul.f32 %v925, %v689
        %v934 = vmul.f32 %v929, %v690
        %939 = vrot.lane.b32.xlu0 %v931, 122
        %v940 = vpop.permute.xlu0 %939
        %941 = vrot.lane.b32.xlu0 %v932, 122
        %v942 = vpop.permute.xlu0 %941
        %943 = vrot.lane.b32.xlu0 %v933, 122
        %v944 = vpop.permute.xlu0 %943
        %945 = vrot.lane.b32.xlu0 %v934, 122
        %v946 = vpop.permute.xlu0 %945
        %v951 = vadd.f32 %v911, %v940
        %v952 = vadd.f32 %v912, %v942
        %v953 = vadd.f32 %v913, %v944
        %v954 = vadd.f32 %v914, %v946
        %v955 = vand.u32 2147483647, %v951
        %v956 = vand.u32 2147483647, %v952
        %v957 = vand.u32 2147483647, %v953
        %v958 = vand.u32 2147483647, %v954
        %v959 = vsub.f32 0.0, %v955
        %v960 = vsub.f32 0.0, %v956
        %v961 = vsub.f32 0.0, %v957
        %v962 = vsub.f32 0.0, %v958
        %v963 = vmul.f32 %v959, 1.442695
        %v964 = vpow.pop %v963
        %v965 = vmul.f32 %v960, 1.442695
        %v966 = vpow.pop %v965
        %v967 = vmul.f32 %v961, 1.442695
        %v968 = vpow.pop %v967
        %v969 = vmul.f32 %v962, 1.442695
        %v970 = vpow.pop %v969
        %vm971 = vcmp.ge.f32.partialorder %v951, 0.0
        %vm972 = vcmp.ge.f32.partialorder %v952, 0.0
        %vm973 = vcmp.ge.f32.partialorder %v953, 0.0
        %vm974 = vcmp.ge.f32.partialorder %v954, 0.0
        %v975 = vadd.f32 %v964, 1.0
        %v976 = vadd.f32 %v966, 1.0
        %v977 = vadd.f32 %v968, 1.0
        %v978 = vadd.f32 %v970, 1.0
        %v979 = vrcp.pop %v975
        %v980 = vmul.f32 1.0, %v979
        %v981 = vrcp.pop %v976
        %v982 = vmul.f32 1.0, %v981
        %v983 = vrcp.pop %v977
        %v984 = vmul.f32 1.0, %v983
        %v985 = vrcp.pop %v978
        %v986 = vmul.f32 1.0, %v985
        %v987 = vmul.f32 %v964, %v979
        %v988 = vmul.f32 %v966, %v981
        %v989 = vmul.f32 %v968, %v983
        %v990 = vmul.f32 %v970, %v985
        %v991 = vsel %vm971, %v980, %v987
        %v992 = vsel %vm972, %v982, %v988
        %v993 = vsel %vm973, %v984, %v989
        %v994 = vsel %vm974, %v986, %v990
        %995 = vrot.lane.b32.xlu0 %v658, 115
        %v996 = vpop.permute.xlu0 %995
        %997 = vrot.lane.b32.xlu0 %v659, 115
        %v998 = vpop.permute.xlu0 %997
        %999 = vrot.lane.b32.xlu0 %v660, 115
        %v1000 = vpop.permute.xlu0 %999
        %1001 = vrot.lane.b32.xlu0 %v661, 115
        %v1002 = vpop.permute.xlu0 %1001
        %v1007 = vsel %vm300, 0.0, %v996
        %v1008 = vsel %vm300, 0.0, %v998
        %v1009 = vsel %vm300, 0.0, %v1000
        %v1010 = vsel %vm300, 0.0, %v1002
        %v1011 = vsel %vm686, %v1007, 0.0
        %v1012 = vsel %vm686, %v1008, 0.0
        %v1013 = vsel %vm686, %v1009, 0.0
        %v1014 = vsel %vm686, %v1010, 0.0
        %v1015 = vmul.f32 %v694, %v1011
        %v1016 = vmul.f32 %v699, %v1012
        %v1017 = vmul.f32 %v704, %v1013
        %v1018 = vmul.f32 %v709, %v1014
        %v1019 = vmul.f32 %v717, %v1011
        %v1020 = vmul.f32 %v721, %v1012
        %v1021 = vmul.f32 %v725, %v1013
        %v1022 = vmul.f32 %v729, %v1014
        %1027 = vrot.lane.b32.xlu0 %v1019, 127
        %v1028 = vpop.permute.xlu0 %1027
        %1029 = vrot.lane.b32.xlu0 %v1020, 127
        %v1030 = vpop.permute.xlu0 %1029
        %1031 = vrot.lane.b32.xlu0 %v1021, 127
        %v1032 = vpop.permute.xlu0 %1031
        %1033 = vrot.lane.b32.xlu0 %v1022, 127
        %v1034 = vpop.permute.xlu0 %1033
        %v1039 = vadd.f32 %v1015, %v1028
        %v1040 = vadd.f32 %v1016, %v1030
        %v1041 = vadd.f32 %v1017, %v1032
        %v1042 = vadd.f32 %v1018, %v1034
        %v1043 = vmul.f32 %v757, %v1011
        %v1044 = vmul.f32 %v761, %v1012
        %v1045 = vmul.f32 %v765, %v1013
        %v1046 = vmul.f32 %v769, %v1014
        %1051 = vrot.lane.b32.xlu0 %v1043, 126
        %v1052 = vpop.permute.xlu0 %1051
        %1053 = vrot.lane.b32.xlu0 %v1044, 126
        %v1054 = vpop.permute.xlu0 %1053
        %1055 = vrot.lane.b32.xlu0 %v1045, 126
        %v1056 = vpop.permute.xlu0 %1055
        %1057 = vrot.lane.b32.xlu0 %v1046, 126
        %v1058 = vpop.permute.xlu0 %1057
        %v1063 = vadd.f32 %v1039, %v1052
        %v1064 = vadd.f32 %v1040, %v1054
        %v1065 = vadd.f32 %v1041, %v1056
        %v1066 = vadd.f32 %v1042, %v1058
        %v1067 = vmul.f32 %v797, %v1011
        %v1068 = vmul.f32 %v801, %v1012
        %v1069 = vmul.f32 %v805, %v1013
        %v1070 = vmul.f32 %v809, %v1014
        %1075 = vrot.lane.b32.xlu0 %v1067, 125
        %v1076 = vpop.permute.xlu0 %1075
        %1077 = vrot.lane.b32.xlu0 %v1068, 125
        %v1078 = vpop.permute.xlu0 %1077
        %1079 = vrot.lane.b32.xlu0 %v1069, 125
        %v1080 = vpop.permute.xlu0 %1079
        %1081 = vrot.lane.b32.xlu0 %v1070, 125
        %v1082 = vpop.permute.xlu0 %1081
        %v1087 = vadd.f32 %v1063, %v1076
        %v1088 = vadd.f32 %v1064, %v1078
        %v1089 = vadd.f32 %v1065, %v1080
        %v1090 = vadd.f32 %v1066, %v1082
        %v1091 = vmul.f32 %v837, %v1011
        %v1092 = vmul.f32 %v841, %v1012
        %v1093 = vmul.f32 %v845, %v1013
        %v1094 = vmul.f32 %v849, %v1014
        %1099 = vrot.lane.b32.xlu0 %v1091, 124
        %v1100 = vpop.permute.xlu0 %1099
        %1101 = vrot.lane.b32.xlu0 %v1092, 124
        %v1102 = vpop.permute.xlu0 %1101
        %1103 = vrot.lane.b32.xlu0 %v1093, 124
        %v1104 = vpop.permute.xlu0 %1103
        %1105 = vrot.lane.b32.xlu0 %v1094, 124
        %v1106 = vpop.permute.xlu0 %1105
        %v1111 = vadd.f32 %v1087, %v1100
        %v1112 = vadd.f32 %v1088, %v1102
        %v1113 = vadd.f32 %v1089, %v1104
        %v1114 = vadd.f32 %v1090, %v1106
        %v1115 = vmul.f32 %v877, %v1011
        %v1116 = vmul.f32 %v881, %v1012
        %v1117 = vmul.f32 %v885, %v1013
        %v1118 = vmul.f32 %v889, %v1014
        %1123 = vrot.lane.b32.xlu0 %v1115, 123
        %v1124 = vpop.permute.xlu0 %1123
        %1125 = vrot.lane.b32.xlu0 %v1116, 123
        %v1126 = vpop.permute.xlu0 %1125
        %1127 = vrot.lane.b32.xlu0 %v1117, 123
        %v1128 = vpop.permute.xlu0 %1127
        %1129 = vrot.lane.b32.xlu0 %v1118, 123
        %v1130 = vpop.permute.xlu0 %1129
        %v1135 = vadd.f32 %v1111, %v1124
        %v1136 = vadd.f32 %v1112, %v1126
        %v1137 = vadd.f32 %v1113, %v1128
        %v1138 = vadd.f32 %v1114, %v1130
        %v1139 = vmul.f32 %v917, %v1011
        %v1140 = vmul.f32 %v921, %v1012
        %v1141 = vmul.f32 %v925, %v1013
        %v1142 = vmul.f32 %v929, %v1014
        %1147 = vrot.lane.b32.xlu0 %v1139, 122
        %v1148 = vpop.permute.xlu0 %1147
        %1149 = vrot.lane.b32.xlu0 %v1140, 122
        %v1150 = vpop.permute.xlu0 %1149
        %1151 = vrot.lane.b32.xlu0 %v1141, 122
        %v1152 = vpop.permute.xlu0 %1151
        %1153 = vrot.lane.b32.xlu0 %v1142, 122
        %v1154 = vpop.permute.xlu0 %1153
        %v1159 = vadd.f32 %v1135, %v1148
        %v1160 = vadd.f32 %v1136, %v1150
        %v1161 = vadd.f32 %v1137, %v1152
        %v1162 = vadd.f32 %v1138, %v1154
        %v1163 = vand.u32 2147483647, %v1159
        %v1164 = vand.u32 2147483647, %v1160
        %v1165 = vand.u32 2147483647, %v1161
        %v1166 = vand.u32 2147483647, %v1162
        %v1167 = vsub.f32 0.0, %v1163
        %v1168 = vsub.f32 0.0, %v1164
        %v1169 = vsub.f32 0.0, %v1165
        %v1170 = vsub.f32 0.0, %v1166
        %v1171 = vmul.f32 %v1167, 1.442695
        %v1172 = vpow.pop %v1171
        %v1173 = vmul.f32 %v1168, 1.442695
        %v1174 = vpow.pop %v1173
        %v1175 = vmul.f32 %v1169, 1.442695
        %v1176 = vpow.pop %v1175
        %v1177 = vmul.f32 %v1170, 1.442695
        %v1178 = vpow.pop %v1177
        %vm1179 = vcmp.ge.f32.partialorder %v1159, 0.0
        %vm1180 = vcmp.ge.f32.partialorder %v1160, 0.0
        %vm1181 = vcmp.ge.f32.partialorder %v1161, 0.0
        %vm1182 = vcmp.ge.f32.partialorder %v1162, 0.0
        %v1183 = vadd.f32 %v1172, 1.0
        %v1184 = vadd.f32 %v1174, 1.0
        %v1185 = vadd.f32 %v1176, 1.0
        %v1186 = vadd.f32 %v1178, 1.0
        %v1187 = vrcp.pop %v1183
        %v1188 = vmul.f32 1.0, %v1187
        %v1189 = vrcp.pop %v1184
        %v1190 = vmul.f32 1.0, %v1189
        %v1191 = vrcp.pop %v1185
        %v1192 = vmul.f32 1.0, %v1191
        %v1193 = vrcp.pop %v1186
        %v1194 = vmul.f32 1.0, %v1193
        %v1195 = vmul.f32 %v1172, %v1187
        %v1196 = vmul.f32 %v1174, %v1189
        %v1197 = vmul.f32 %v1176, %v1191
        %v1198 = vmul.f32 %v1178, %v1193
        %v1199 = vsel %vm1179, %v1188, %v1195
        %v1200 = vsel %vm1180, %v1190, %v1196
        %v1201 = vsel %vm1181, %v1192, %v1197
        %v1202 = vsel %vm1182, %v1194, %v1198
        %v1203 = vpack.c.bf16 %v992, %v991
        %v1204 = vpack.c.bf16 %v994, %v993
        %v1205 = vunpack.c.l.bf16 %v1203
        %v1206 = vunpack.c.h.bf16 %v1203
        %v1207 = vunpack.c.l.bf16 %v1204
        %v1208 = vunpack.c.h.bf16 %v1204
        %v1209 = vsub.f32 %v991, %v1205
        %v1210 = vsub.f32 %v992, %v1206
        %v1211 = vsub.f32 %v993, %v1207
        %v1212 = vsub.f32 %v994, %v1208
        %v1213 = vpack.c.bf16 %v1210, %v1209
        %v1214 = vpack.c.bf16 %v1212, %v1211
        %vm1215 = vcmask 130048
        %v1217 = vsel %vm1215, %v1203, 0
        %v1220 = vsel %vm1215, %v1204, 0
        %v1223 = vsel %vm1215, %v1213, 0
        %v1226 = vsel %vm1215, %v1214, 0
        %v1229 = vsel %vm1215, %v557, 0
        %v1232 = vsel %vm1215, %v558, 0
        %v1235 = vsel %vm1215, %v559, 0
        %v1238 = vsel %vm1215, %v560, 0
        %v1241 = vsel %vm1215, %v561, 0
        %v1244 = vsel %vm1215, %v562, 0
        %v1247 = vsel %vm1215, %v563, 0
        %v1250 = vsel %vm1215, %v564, 0
        %v1253 = vsel %vm1215, %v565, 0
        %v1256 = vsel %vm1215, %v566, 0
        %v1259 = vsel %vm1215, %v567, 0
        %v1262 = vsel %vm1215, %v568, 0
        %v1265 = vsel %vm1215, %v569, 0
        %v1268 = vsel %vm1215, %v570, 0
        %v1271 = vsel %vm1215, %v571, 0
        %v1274 = vsel %vm1215, %v572, 0
        %1276 = vmatprep.subr.bf16.mxu0 0
        %1277 = vmatpush1.bf16.xpose.msra.mxu0 %v1250
        %1278 = vmatprep.subr.bf16.mxu0 0
        %1279 = vmatpush1.bf16.xpose.msra.mxu0 %v1247
        %1280 = vmatprep.subr.bf16.mxu0 0
        %1281 = vmatpush1.bf16.xpose.msra.mxu0 %v1244
        %1282 = vmatprep.subr.bf16.mxu0 0
        %1283 = vmatpush1.bf16.xpose.msra.mxu0 %v1241
        %1284 = vmatprep.subr.bf16.mxu0 0
        %1285 = vmatpush1.bf16.xpose.msra.mxu0 %v1238
        %1286 = vmatprep.subr.bf16.mxu0 0
        %1287 = vmatpush1.bf16.xpose.msra.mxu0 %v1235
        %1288 = vmatprep.subr.bf16.mxu0 0
        %1289 = vmatpush1.bf16.xpose.msra.mxu0 %v1232
        %1290 = vmatprep.subr.bf16.mxu0 0
        %1291 = vmatpush1.bf16.xpose.msra.mxu0 %v1229
        %1292 = vmatprep.subr.bf16.mxu0 0
        %1293 = vmatpush2.bf16.xpose.msra.mxu0 %v1274
        %1294 = vmatprep.subr.bf16.mxu0 0
        %1295 = vmatpush2.bf16.xpose.msra.mxu0 %v1271
        %1296 = vmatprep.subr.bf16.mxu0 0
        %1297 = vmatpush2.bf16.xpose.msra.mxu0 %v1268
        %1298 = vmatprep.subr.bf16.mxu0 0
        %1299 = vmatpush2.bf16.xpose.msra.mxu0 %v1265
        %1300 = vmatprep.subr.bf16.mxu0 0
        %1301 = vmatpush2.bf16.xpose.msra.mxu0 %v1262
        %1302 = vmatprep.subr.bf16.mxu0 0
        %1303 = vmatpush2.bf16.xpose.msra.mxu0 %v1259
        %1304 = vmatprep.subr.bf16.mxu0 0
        %1305 = vmatpush2.bf16.xpose.msra.mxu0 %v1256
        %1306 = vmatprep.subr.bf16.mxu0 0
        %1307 = vmatpush2.bf16.xpose.msra.mxu0 %v1253
        %1308 = vmatprep.mubr.bf16.mxu0 0
        %1309 = vmatmul.mubr.bf16.gmra.mxu0 %v1217
        %v1310 = vpop.f32.mrf.mxu0
        %v1311 = vadd.f32 0.0, %v1310
        %v1312 = vpop.f32.mrf.mxu0
        %v1313 = vadd.f32 0.0, %v1312
        %v1314 = vpop.f32.mrf.mxu0
        %v1315 = vadd.f32 0.0, %v1314
        %v1316 = vpop.f32.mrf.mxu0
        %v1317 = vadd.f32 0.0, %v1316
        %1318 = vmatprep.mubr.bf16.mxu0 0
        %1319 = vmatmul.mubr.bf16.gmra.mxu0 %v1220
        %v1320 = vpop.f32.mrf.mxu0
        %v1321 = vadd.f32 0.0, %v1320
        %v1322 = vpop.f32.mrf.mxu0
        %v1323 = vadd.f32 0.0, %v1322
        %v1324 = vpop.f32.mrf.mxu0
        %v1325 = vadd.f32 0.0, %v1324
        %v1326 = vpop.f32.mrf.mxu0
        %v1327 = vadd.f32 0.0, %v1326
        %1328 = vmatprep.mubr.bf16.mxu0 0
        %1329 = vmatmul.mubr.bf16.gmra.mxu0 %v1223
        %v1330 = vpop.f32.mrf.mxu0
        %v1331 = vadd.f32 0.0, %v1330
        %v1332 = vpop.f32.mrf.mxu0
        %v1333 = vadd.f32 0.0, %v1332
        %v1334 = vpop.f32.mrf.mxu0
        %v1335 = vadd.f32 0.0, %v1334
        %v1336 = vpop.f32.mrf.mxu0
        %v1337 = vadd.f32 0.0, %v1336
        %1338 = vmatprep.mubr.bf16.mxu0 0
        %1339 = vmatmul.mubr.bf16.gmra.mxu0 %v1226
        %v1340 = vpop.f32.mrf.mxu0
        %v1341 = vadd.f32 0.0, %v1340
        %v1342 = vpop.f32.mrf.mxu0
        %v1343 = vadd.f32 0.0, %v1342
        %v1344 = vpop.f32.mrf.mxu0
        %v1345 = vadd.f32 0.0, %v1344
        %v1346 = vpop.f32.mrf.mxu0
        %v1347 = vadd.f32 0.0, %v1346
        %1348 = vdwg.mxu0
        %v1349 = vadd.f32 %v1311, %v1331
        %v1350 = vadd.f32 %v1313, %v1333
        %v1351 = vadd.f32 %v1315, %v1335
        %v1352 = vadd.f32 %v1317, %v1337
        %v1353 = vadd.f32 %v1321, %v1341
        %v1354 = vadd.f32 %v1323, %v1343
        %v1355 = vadd.f32 %v1325, %v1345
        %v1356 = vadd.f32 %v1327, %v1347
        %v1357 = vpack.c.bf16 %v1200, %v1199
        %v1358 = vpack.c.bf16 %v1202, %v1201
        %v1359 = vunpack.c.l.bf16 %v1357
        %v1360 = vunpack.c.h.bf16 %v1357
        %v1361 = vunpack.c.l.bf16 %v1358
        %v1362 = vunpack.c.h.bf16 %v1358
        %v1363 = vsub.f32 %v1199, %v1359
        %v1364 = vsub.f32 %v1200, %v1360
        %v1365 = vsub.f32 %v1201, %v1361
        %v1366 = vsub.f32 %v1202, %v1362
        %v1367 = vpack.c.bf16 %v1364, %v1363
        %v1368 = vpack.c.bf16 %v1366, %v1365
        %1369 = vrot.lane.b32.xlu0 %v557, 112
        %v1370 = vpop.permute.xlu0 %1369
        %1371 = vrot.lane.b32.xlu0 %v558, 112
        %v1372 = vpop.permute.xlu0 %1371
        %1373 = vrot.lane.b32.xlu0 %v559, 112
        %v1374 = vpop.permute.xlu0 %1373
        %1375 = vrot.lane.b32.xlu0 %v560, 112
        %v1376 = vpop.permute.xlu0 %1375
        %1377 = vrot.lane.b32.xlu0 %v561, 112
        %v1378 = vpop.permute.xlu0 %1377
        %1379 = vrot.lane.b32.xlu0 %v562, 112
        %v1380 = vpop.permute.xlu0 %1379
        %1381 = vrot.lane.b32.xlu0 %v563, 112
        %v1382 = vpop.permute.xlu0 %1381
        %1383 = vrot.lane.b32.xlu0 %v564, 112
        %v1384 = vpop.permute.xlu0 %1383
        %1385 = vrot.lane.b32.xlu0 %v565, 112
        %v1386 = vpop.permute.xlu0 %1385
        %1387 = vrot.lane.b32.xlu0 %v566, 112
        %v1388 = vpop.permute.xlu0 %1387
        %1389 = vrot.lane.b32.xlu0 %v567, 112
        %v1390 = vpop.permute.xlu0 %1389
        %1391 = vrot.lane.b32.xlu0 %v568, 112
        %v1392 = vpop.permute.xlu0 %1391
        %1393 = vrot.lane.b32.xlu0 %v569, 112
        %v1394 = vpop.permute.xlu0 %1393
        %1395 = vrot.lane.b32.xlu0 %v570, 112
        %v1396 = vpop.permute.xlu0 %1395
        %1397 = vrot.lane.b32.xlu0 %v571, 112
        %v1398 = vpop.permute.xlu0 %1397
        %1399 = vrot.lane.b32.xlu0 %v572, 112
        %v1400 = vpop.permute.xlu0 %1399
        %v1402 = vsel %vm1215, %v1357, 0
        %v1405 = vsel %vm1215, %v1358, 0
        %v1408 = vsel %vm1215, %v1367, 0
        %v1411 = vsel %vm1215, %v1368, 0
        %v1414 = vsel %vm1215, %v1370, 0
        %v1417 = vsel %vm1215, %v1372, 0
        %v1420 = vsel %vm1215, %v1374, 0
        %v1423 = vsel %vm1215, %v1376, 0
        %v1426 = vsel %vm1215, %v1378, 0
        %v1429 = vsel %vm1215, %v1380, 0
        %v1432 = vsel %vm1215, %v1382, 0
        %v1435 = vsel %vm1215, %v1384, 0
        %v1438 = vsel %vm1215, %v1386, 0
        %v1441 = vsel %vm1215, %v1388, 0
        %v1444 = vsel %vm1215, %v1390, 0
        %v1447 = vsel %vm1215, %v1392, 0
        %v1450 = vsel %vm1215, %v1394, 0
        %v1453 = vsel %vm1215, %v1396, 0
        %v1456 = vsel %vm1215, %v1398, 0
        %v1459 = vsel %vm1215, %v1400, 0
        %1461 = vmatprep.subr.bf16.mxu0 0
        %1462 = vmatpush1.bf16.xpose.msra.mxu0 %v1435
        %1463 = vmatprep.subr.bf16.mxu0 0
        %1464 = vmatpush1.bf16.xpose.msra.mxu0 %v1432
        %1465 = vmatprep.subr.bf16.mxu0 0
        %1466 = vmatpush1.bf16.xpose.msra.mxu0 %v1429
        %1467 = vmatprep.subr.bf16.mxu0 0
        %1468 = vmatpush1.bf16.xpose.msra.mxu0 %v1426
        %1469 = vmatprep.subr.bf16.mxu0 0
        %1470 = vmatpush1.bf16.xpose.msra.mxu0 %v1423
        %1471 = vmatprep.subr.bf16.mxu0 0
        %1472 = vmatpush1.bf16.xpose.msra.mxu0 %v1420
        %1473 = vmatprep.subr.bf16.mxu0 0
        %1474 = vmatpush1.bf16.xpose.msra.mxu0 %v1417
        %1475 = vmatprep.subr.bf16.mxu0 0
        %1476 = vmatpush1.bf16.xpose.msra.mxu0 %v1414
        %1477 = vmatprep.subr.bf16.mxu0 0
        %1478 = vmatpush2.bf16.xpose.msra.mxu0 %v1459
        %1479 = vmatprep.subr.bf16.mxu0 0
        %1480 = vmatpush2.bf16.xpose.msra.mxu0 %v1456
        %1481 = vmatprep.subr.bf16.mxu0 0
        %1482 = vmatpush2.bf16.xpose.msra.mxu0 %v1453
        %1483 = vmatprep.subr.bf16.mxu0 0
        %1484 = vmatpush2.bf16.xpose.msra.mxu0 %v1450
        %1485 = vmatprep.subr.bf16.mxu0 0
        %1486 = vmatpush2.bf16.xpose.msra.mxu0 %v1447
        %1487 = vmatprep.subr.bf16.mxu0 0
        %1488 = vmatpush2.bf16.xpose.msra.mxu0 %v1444
        %1489 = vmatprep.subr.bf16.mxu0 0
        %1490 = vmatpush2.bf16.xpose.msra.mxu0 %v1441
        %1491 = vmatprep.subr.bf16.mxu0 0
        %1492 = vmatpush2.bf16.xpose.msra.mxu0 %v1438
        %1493 = vmatprep.mubr.bf16.mxu0 0
        %1494 = vmatmul.mubr.bf16.gmra.mxu0 %v1402
        %v1495 = vpop.f32.mrf.mxu0
        %v1496 = vadd.f32 0.0, %v1495
        %v1497 = vpop.f32.mrf.mxu0
        %v1498 = vadd.f32 0.0, %v1497
        %v1499 = vpop.f32.mrf.mxu0
        %v1500 = vadd.f32 0.0, %v1499
        %v1501 = vpop.f32.mrf.mxu0
        %v1502 = vadd.f32 0.0, %v1501
        %1503 = vmatprep.mubr.bf16.mxu0 0
        %1504 = vmatmul.mubr.bf16.gmra.mxu0 %v1405
        %v1505 = vpop.f32.mrf.mxu0
        %v1506 = vadd.f32 0.0, %v1505
        %v1507 = vpop.f32.mrf.mxu0
        %v1508 = vadd.f32 0.0, %v1507
        %v1509 = vpop.f32.mrf.mxu0
        %v1510 = vadd.f32 0.0, %v1509
        %v1511 = vpop.f32.mrf.mxu0
        %v1512 = vadd.f32 0.0, %v1511
        %1513 = vmatprep.mubr.bf16.mxu0 0
        %1514 = vmatmul.mubr.bf16.gmra.mxu0 %v1408
        %v1515 = vpop.f32.mrf.mxu0
        %v1516 = vadd.f32 0.0, %v1515
        %v1517 = vpop.f32.mrf.mxu0
        %v1518 = vadd.f32 0.0, %v1517
        %v1519 = vpop.f32.mrf.mxu0
        %v1520 = vadd.f32 0.0, %v1519
        %v1521 = vpop.f32.mrf.mxu0
        %v1522 = vadd.f32 0.0, %v1521
        %1523 = vmatprep.mubr.bf16.mxu0 0
        %1524 = vmatmul.mubr.bf16.gmra.mxu0 %v1411
        %v1525 = vpop.f32.mrf.mxu0
        %v1526 = vadd.f32 0.0, %v1525
        %v1527 = vpop.f32.mrf.mxu0
        %v1528 = vadd.f32 0.0, %v1527
        %v1529 = vpop.f32.mrf.mxu0
        %v1530 = vadd.f32 0.0, %v1529
        %v1531 = vpop.f32.mrf.mxu0
        %v1532 = vadd.f32 0.0, %v1531
        %1533 = vdwg.mxu0
        %v1534 = vadd.f32 %v1496, %v1516
        %v1535 = vadd.f32 %v1498, %v1518
        %v1536 = vadd.f32 %v1500, %v1520
        %v1537 = vadd.f32 %v1502, %v1522
        %v1538 = vadd.f32 %v1506, %v1526
        %v1539 = vadd.f32 %v1508, %v1528
        %v1540 = vadd.f32 %v1510, %v1530
        %v1541 = vadd.f32 %v1512, %v1532
        %v1542 = vmul.f32 %v461, %v1349
        %v1543 = vmul.f32 %v462, %v1350
        %v1544 = vmul.f32 %v463, %v1351
        %v1545 = vmul.f32 %v464, %v1352
        %v1546 = vmul.f32 %v465, %v1353
        %v1547 = vmul.f32 %v466, %v1354
        %v1548 = vmul.f32 %v467, %v1355
        %v1549 = vmul.f32 %v468, %v1356
        %v1550 = vmul.f32 %v1542, %v1534
        %v1551 = vmul.f32 %v1543, %v1535
        %v1552 = vmul.f32 %v1544, %v1536
        %v1553 = vmul.f32 %v1545, %v1537
        %v1554 = vmul.f32 %v1546, %v1538
        %v1555 = vmul.f32 %v1547, %v1539
        %v1556 = vmul.f32 %v1548, %v1540
        %v1557 = vmul.f32 %v1549, %v1541
        %s1558 = scalar_lea.vmem %s216, 16 [#allocation5]
        %1559 = vst [vmem:[%s1558] sm:$0xff] %v1550
        %1560 = vst [vmem:[%s1558 + $0x8] sm:$0xff] %v1551
        %1561 = vst [vmem:[%s1558 + $0x20] sm:$0xff] %v1552
        %1562 = vst [vmem:[%s1558 + $0x28] sm:$0xff] %v1553
        %1563 = vst [vmem:[%s1558 + $0x40] sm:$0xff] %v1554
        %1564 = vst [vmem:[%s1558 + $0x48] sm:$0xff] %v1555
        %1565 = vst [vmem:[%s1558 + $0x60] sm:$0xff] %v1556
        %1566 = vst [vmem:[%s1558 + $0x68] sm:$0xff] %v1557
        %s1567 = sand.u32 %s118, 1
        %s1568 = scalar_lea.sflag [#allocation4], %s1567
        %s1569 = sand.u32 %s118, 1
        %s1570 = smul.addr %s1569, 128
        %s1571 = scalar_lea.vmem [#allocation5], %s1570
        // Predicated region
        $region41: #{tpu_custom_call.1} parent=35 // pred_check
          %p1572 = pneg %p128
        $region42: #{tpu_custom_call.1} parent=35 // pred_check_branch
          %1574 = sbr.rel (%p1572) target = $region44
        $region43: #{tpu_custom_call.1} parent=35 // pred_region
          %s1575 = smul.u32 4, %s21
          %s1577 = ssub.s32 2048, 2048
          %1578 = vsyncadd %s1568, %s1577
          %s1579 = smul.addr %s1575, 4
          %s1580 = smul.addr %s1579, 128
          %s1581 = scalar_lea.hbm %s4, %s1580
          %s1582 = sshll.u32 %s1571, 4
          %s1583 = int_to_ptr.vmem [resolvable:$true] %s1582
          %1588 = dma.vmem_to_hbm [thread:$0]  %s1583, 2048, %s1581, %s1568, 256, 256, 16
        $region44: #{tpu_custom_call.1} parent=35 // pred_fallthru
          _
      $region36: #{tpu_custom_call.1} parent=5 // pred_fallthru
        _
      %p1589 = scmp.le.s32.totalorder 2, %s16
      // Predicated region
      $region45: #{tpu_custom_call.1} parent=5 // pred_check
        %p1590 = pneg %p1589
      $region46: #{tpu_custom_call.1} parent=5 // pred_check_branch
        %1592 = sbr.rel (%p1590) target = $region48
      $region47: #{tpu_custom_call.1} parent=5 // pred_region
        %s1593 = ssub.s32 %s16, 2
        // Predicated region
        $region49: #{tpu_custom_call.1} parent=47 // pred_check
          %p1594 = pneg %p134
        $region50: #{tpu_custom_call.1} parent=47 // pred_check_branch
          %1596 = sbr.rel (%p1594) target = $region52
        $region51: #{tpu_custom_call.1} parent=47 // pred_region
          %s1597 = sand.u32 %s119, 1
          %s1598 = scalar_lea.sflag [#allocation4], %s1597
          %s1599 = sand.u32 %s119, 1
          %s1600 = smul.addr %s1599, 128
          %s1601 = scalar_lea.vmem [#allocation5], %s1600
          %1602 = dma.done %s1598, 2048
        $region52: #{tpu_custom_call.1} parent=47 // pred_fallthru
          _
      $region48: #{tpu_custom_call.1} parent=5 // pred_fallthru
        _
    $region6: #{tpu_custom_call.1} parent=1 // loop_footer
      %s20 = sadd.s32 1, %s16
    $region7: #{tpu_custom_call.1} parent=1 // loop_footer_branch
      %15 = sbr.rel target = $region3
    $region8: #{tpu_custom_call.1} parent=1 // loop_exit
      _
    %1603 = vsyncpa [#allocation3], 1
    %s1604 = scalar_lea.sflag [#allocation3], 1
    %1605 = vsyncpa %s1604, 1
    %1606 = vsyncpa [#allocation4], 1
    %s1607 = scalar_lea.sflag [#allocation4], 1
    %1608 = vsyncpa %s1607, 1

</llo_original>
